<compile_context>
chip_gen: v7x
topology: tpu7x:2x2x1
jax: 0.10.0
libtpu: 0.0.40
codegen_flags: <defaults>
</compile_context>

<pallas_src>
import math

import numpy as np
import jax
import jax.numpy as jnp
from jax import lax
from jax.experimental import pallas as pl
from jax.experimental.pallas import tpu as pltpu

# ----------------------------- model config ---------------------------------
NUM_LAYERS = 2
D_MODEL = 128            # d_model == dff in the PyTorch module
NUM_HEADS = 2
HEAD_DIM = D_MODEL // NUM_HEADS
SEQ_LEN = 4              # sequence_length (== max_len of the positional emb)
BATCH = 2
LN_EPS = 1e-5
MASK_NEG = -30000.0      # finite masking constant; exp(MASK_NEG) underflows to 0 in f32


def _sinusoidal_pe(max_len, d_feature, max_timescale=10000.0):
    """Matches sinusoidal_init() in the PyTorch module."""
    pe = np.zeros((max_len, d_feature), dtype=np.float32)
    position = np.arange(0, max_len)[:, np.newaxis]
    div_term = np.exp(np.arange(0, d_feature, 2) * -(np.log(max_timescale) / d_feature))
    pe[:, 0::2] = np.sin(position * div_term)
    pe[:, 1::2] = np.cos(position * div_term)
    return jnp.asarray(pe)


def _layernorm(x, gamma, beta):
    # var = E[x^2] - mu^2: the two cross-lane reductions are independent and can
    # issue back-to-back on the XLU (vs. the serial mean -> subtract -> mean chain).
    mu = jnp.mean(x, axis=-1, keepdims=True)
    var = jnp.mean(x * x, axis=-1, keepdims=True) - mu * mu
    return (x - mu) * lax.rsqrt(var + LN_EPS) * gamma + beta


# ------------------------------ Pallas kernel --------------------------------
def _tt_kernel(x_ref, padrow_ref, blkmask_ref, pool_ref,
               l1w_ref, l1bpe_ref,
               ln1w_ref, ln1b_ref, ln2w_ref, ln2b_ref,
               qkvw_ref, qkvb_ref, opb_ref,
               f1w_ref, f1b_ref, f2w_ref, f2b_ref,
               lnfw_ref, lnfb_ref, out_ref):
    f32 = jnp.float32
    bf16 = jnp.bfloat16
    x = x_ref[...]                                   # (B*T, D) f32, all batches in one step

    # Additive attention mask, built once: static block-diagonal (batch isolation)
    # + per-call key-padding row.  Both use the finite MASK_NEG constant, so the
    # softmax needs no max-subtraction for stability.
    add_mask = blkmask_ref[...] + padrow_ref[...]    # (B*T, B*T)

    # l1 (sqrt(d_model) folded into the bf16 weight); bias*sqrt(d) + PE precombined.
    # bf16 activation x bf16 weight -> f32 accumulate (native single-pass MXU path).
    h = jnp.dot(x.astype(bf16), l1w_ref[...], preferred_element_type=f32) + l1bpe_ref[...]
    # Dropout = identity (inference).

    for l in range(NUM_LAYERS):
        # ---- pre-norm multi-head self-attention ----
        x1 = _layernorm(h, ln1w_ref[l], ln1b_ref[l])
        # Fused projection: columns = [Q(scaled) | K | V'_head0 | V'_head1] where
        # V'_h = W_v_h @ W_o_h was folded on the host.  (B*T, 4D)
        qkv = jnp.dot(x1.astype(bf16), qkvw_ref[l],
                      preferred_element_type=f32) + qkvb_ref[l]

        attn = None
        for hd in range(NUM_HEADS):                  # static 2-way unroll
            qo = hd * HEAD_DIM
            ko = D_MODEL + hd * HEAD_DIM
            vo = 2 * D_MODEL + hd * D_MODEL
            qs = qkv[:, qo:qo + HEAD_DIM]            # (B*T, HEAD_DIM); 1/sqrt(hd) pre-folded
            ks = qkv[:, ko:ko + HEAD_DIM]
            vs = qkv[:, vo:vo + D_MODEL]             # (B*T, D): out-proj already folded in

            # scores: contract last dims directly (MXU trans_b, no explicit ks.T)
            s = lax.dot_general(qs, ks, (((1,), (1,)), ((), ())),
                                preferred_element_type=f32)       # (B*T, B*T)
            s = s + add_mask
            p = jnp.exp(s)                                        # no max-sub (finite mask)
            p = p * pl.reciprocal(jnp.sum(p, axis=-1, keepdims=True), approx=True)
            # context already lands in model space thanks to the folded V'
            part = jnp.dot(p, vs, preferred_element_type=f32)     # (B*T, D), lane-dense
            attn = part if attn is None else attn + part

        x3 = h + attn + opb_ref[l]

        # ---- pre-norm feed-forward ----
        x4 = _layernorm(x3, ln2w_ref[l], ln2b_ref[l])
        x5 = jnp.dot(x4.astype(bf16), f1w_ref[l], preferred_element_type=f32) + f1b_ref[l]
        x5 = jnp.maximum(x5, 0.0)
        x5 = jnp.dot(x5.astype(bf16), f2w_ref[l], preferred_element_type=f32) + f2b_ref[l]
        h = x3 + x5

    # mean over time per batch (tiny pooling matmul, lane-dense out), then final LN.
    m = jnp.dot(pool_ref[...], h, preferred_element_type=f32)     # (B, D)
    out_ref[...] = _layernorm(m, lnfw_ref[...], lnfb_ref[...])


# ------------------------------- wrapper --------------------------------------
@jax.jit
def temporal_transformer(x, padding_mask, prep):
    """x: (B, T, D) float32, padding_mask: (B, T) bool (True = ignore key)."""
    B, T, D = x.shape
    bt = B * T
    x_flat = x.reshape(bt, D)

    # Single cheap op per call: padding mask -> additive (1, B*T) row.
    pad_row = jnp.where(padding_mask.reshape(1, bt),
                        jnp.float32(MASK_NEG), jnp.float32(0.0))

    def full(shape):
        nd = len(shape)
        return pl.BlockSpec(shape, lambda i, _nd=nd: (0,) * _nd)

    in_specs = [
        full((bt, D)),                                   # x (flattened)
        full((1, bt)),                                   # key-padding additive row
        full((bt, bt)),                                  # static block-diagonal mask
        full((B, bt)),                                   # temporal-mean pooling matrix
        full((D, D)),                                    # l1 weight (bf16, sqrt(d) folded)
        full((bt, D)),                                   # l1 bias*sqrt(d) + PE (tiled)
        full((NUM_LAYERS, 1, D)),                        # ln1 gamma
        full((NUM_LAYERS, 1, D)),                        # ln1 beta
        full((NUM_LAYERS, 1, D)),                        # ln2 gamma
        full((NUM_LAYERS, 1, D)),                        # ln2 beta
        full((NUM_LAYERS, D, 4 * D)),                    # fused [Q|K|V'] weight (bf16)
        full((NUM_LAYERS, 1, 4 * D)),                    # fused [Q|K|V'] bias
        full((NUM_LAYERS, 1, D)),                        # out_proj bias
        full((NUM_LAYERS, D, D)),                        # ffn l1 weight (bf16)
        full((NUM_LAYERS, 1, D)),                        # ffn l1 bias
        full((NUM_LAYERS, D, D)),                        # ffn l2 weight (bf16)
        full((NUM_LAYERS, 1, D)),                        # ffn l2 bias
        full((1, D)),                                    # final LN gamma
        full((1, D)),                                    # final LN beta
    ]

    args = (x_flat, pad_row, prep['blkmask'], prep['pool'],
            prep['l1_w'], prep['l1_bpe'],
            prep['ln1_w'], prep['ln1_b'], prep['ln2_w'], prep['ln2_b'],
            prep['qkv_w'], prep['qkv_b'], prep['opb'],
            prep['f1w'], prep['f1b'], prep['f2w'], prep['f2b'],
            prep['lnf_w'], prep['lnf_b'])

    return pl.pallas_call(
        _tt_kernel,
        out_shape=jax.ShapeDtypeStruct((B, D), jnp.float32),
        grid_spec=pltpu.PrefetchScalarGridSpec(
            num_scalar_prefetch=0,
            grid=(1,),                                   # single step: grid overhead paid once
            in_specs=in_specs,
            out_specs=pl.BlockSpec((B, D), lambda i: (0, 0)),
        ),
        compiler_params=pltpu.CompilerParams(
            dimension_semantics=("arbitrary",)),
    )(*args)


# ------------------------- params (PyTorch init) ------------------------------
def make_params(key):
    D, L = D_MODEL, NUM_LAYERS
    ks = jax.random.split(key, 8)

    def unif(k, shape, lo=0.0, hi=0.05):
        return jax.random.uniform(k, shape, jnp.float32, lo, hi)

    # TODO(synk): the `type == 'stack'` branch (flatten + l2 over dff*4) is not exercised;
    # the default path (mean over time + LayerNorm) is implemented.
    return {
        # top-level l1 (uniform(0, 0.05) as in the module), weight stored as (in, out)
        'l1_w': unif(ks[0], (D, D)),
        'l1_b': unif(ks[1], (1, D)),
        'pe': _sinusoidal_pe(SEQ_LEN, D),
        # per-layer LayerNorms (default gamma=1, beta=0)
        'ln1_w': jnp.ones((L, 1, D), jnp.float32),
        'ln1_b': jnp.zeros((L, 1, D), jnp.float32),
        'ln2_w': jnp.ones((L, 1, D), jnp.float32),
        'ln2_b': jnp.zeros((L, 1, D), jnp.float32),
        # MHA in/out projections (weights pre-transposed to (in, out); biases zero)
        'ipw': unif(ks[2], (L, D, 3 * D), -0.05, 0.05),
        'ipb': jnp.zeros((L, 1, 3 * D), jnp.float32),
        'opw': unif(ks[3], (L, D, D), -0.05, 0.05),
        'opb': jnp.zeros((L, 1, D), jnp.float32),
        # per-layer FFN (uniform(0, 0.05) as in the module)
        'f1w': unif(ks[4], (L, D, D)),
        'f1b': unif(ks[5], (L, 1, D)),
        'f2w': unif(ks[6], (L, D, D)),
        'f2b': unif(ks[7], (L, 1, D)),
        # final LayerNorm
        'lnf_w': jnp.ones((1, D), jnp.float32),
        'lnf_b': jnp.zeros((1, D), jnp.float32),
    }


def prepare_params(params, batch):
    """One-time host-side parameter preparation: scale folding, W_o folded into the
    V columns (per head V' = W_v_h @ W_o_h, done in f32 then stored bf16), bf16
    storage for all large weight matrices, static block-diagonal mask and the
    temporal-mean pooling matrix."""
    D, L, T, H = D_MODEL, NUM_LAYERS, SEQ_LEN, NUM_HEADS
    hd = HEAD_DIM
    sqrt_d = math.sqrt(D)
    inv_sqrt_hd = 1.0 / math.sqrt(hd)
    bf16 = jnp.bfloat16

    l1_w = (params['l1_w'] * sqrt_d).astype(bf16)                        # sqrt(d_model) folded
    l1_bpe = jnp.tile(params['l1_b'] * sqrt_d + params['pe'], (batch, 1))  # (B*T, D) f32

    # Split in_proj into Q / K / V and fold scales + out projection.
    W_q = params['ipw'][:, :, 0:D] * inv_sqrt_hd                         # q-scale folded
    W_k = params['ipw'][:, :, D:2 * D]
    W_v = params['ipw'][:, :, 2 * D:3 * D]
    b_q = params['ipb'][:, :, 0:D] * inv_sqrt_hd
    b_k = params['ipb'][:, :, D:2 * D]
    b_v = params['ipb'][:, :, 2 * D:3 * D]
    W_o = params['opw']                                                  # (L, D, D) (in, out)

    vp_w, vp_b = [], []
    for h in range(H):
        Wv_h = W_v[:, :, h * hd:(h + 1) * hd]                            # (L, D, hd)
        Wo_h = W_o[:, h * hd:(h + 1) * hd, :]                            # (L, hd, D)
        vp_w.append(jnp.einsum('ldh,lhe->lde', Wv_h, Wo_h))              # V'_h = Wv_h @ Wo_h
        bv_h = b_v[:, :, h * hd:(h + 1) * hd]                            # (L, 1, hd)
        vp_b.append(jnp.einsum('lqh,lhe->lqe', bv_h, Wo_h))              # exact: softmax rows sum to 1

    qkv_w = jnp.concatenate([W_q, W_k] + vp_w, axis=-1).astype(bf16)     # (L, D, 4D) bf16
    qkv_b = jnp.concatenate([b_q, b_k] + vp_b, axis=-1)                  # (L, 1, 4D) f32

    # Static block-diagonal additive mask (batch isolation) and mean-pooling matrix.
    bt = batch * T
    batch_ids = np.repeat(np.arange(batch), T)
    same = batch_ids[:, None] == batch_ids[None, :]
    blkmask = np.where(same, 0.0, MASK_NEG).astype(np.float32)           # (bt, bt)
    pool = np.zeros((batch, bt), np.float32)
    pool[batch_ids, np.arange(bt)] = 1.0 / T                             # mean over time

    return {
        'blkmask': jnp.asarray(blkmask),
        'pool': jnp.asarray(pool),
        'l1_w': l1_w, 'l1_bpe': l1_bpe,
        'ln1_w': params['ln1_w'], 'ln1_b': params['ln1_b'],
        'ln2_w': params['ln2_w'], 'ln2_b': params['ln2_b'],
        'qkv_w': qkv_w, 'qkv_b': qkv_b, 'opb': params['opb'],
        'f1w': params['f1w'].astype(bf16), 'f1b': params['f1b'],
        'f2w': params['f2w'].astype(bf16), 'f2b': params['f2b'],
        'lnf_w': params['lnf_w'], 'lnf_b': params['lnf_b'],
    }


# ------------------------- pure-JAX reference (check) ------------------------
def reference(x, padding_mask, prep):
    """Pure-JAX reference over (B, T, D) following the PyTorch module's forward.
    Uses the SAME folded bf16 weights and the same bf16-activation / f32-accumulate
    matmul path as the kernel, so the check isolates the kernel math.  The scale
    foldings and the W_v @ W_o fold are exact rewrites of the module's explicit
    `* sqrt(d_model)`, `/ sqrt(head_dim)` and concat(heads) @ W_o."""
    B, T, D = x.shape
    f32, bf16 = jnp.float32, jnp.bfloat16
    add_mask = jnp.where(padding_mask, MASK_NEG, 0.0)[:, None, :]        # (B, 1, T)

    h = jnp.dot(x.astype(bf16), prep['l1_w'],
                preferred_element_type=f32) + prep['l1_bpe'][:T]
    for l in range(NUM_LAYERS):
        x1 = _layernorm(h, prep['ln1_w'][l], prep['ln1_b'][l])
        qkv = jnp.dot(x1.astype(bf16), prep['qkv_w'][l],
                      preferred_element_type=f32) + prep['qkv_b'][l]
        attn = None
        for hd in range(NUM_HEADS):
            qs = qkv[..., hd * HEAD_DIM:(hd + 1) * HEAD_DIM]
            ks = qkv[..., D + hd * HEAD_DIM: D + (hd + 1) * HEAD_DIM]
            vs = qkv[..., 2 * D + hd * D: 2 * D + (hd + 1) * D]
            s = jnp.einsum('btd,bsd->bts', qs, ks) + add_mask            # q already scaled
            a = jax.nn.softmax(s, axis=-1)
            part = jnp.einsum('bts,bsd->btd', a, vs)                     # out-proj folded in V'
            attn = part if attn is None else attn + part
        x3 = h + attn + prep['opb'][l]
        x4 = _layernorm(x3, prep['ln2_w'][l], prep['ln2_b'][l])
        x5 = jnp.dot(x4.astype(bf16), prep['f1w'][l],
                     preferred_element_type=f32) + prep['f1b'][l]
        x5 = jnp.maximum(x5, 0.0)
        x5 = jnp.dot(x5.astype(bf16), prep['f2w'][l],
                     preferred_element_type=f32) + prep['f2b'][l]
        h = x3 + x5
    m = jnp.mean(h, axis=1)
    return _layernorm(m, prep['lnf_w'], prep['lnf_b'])


# ---------------------------------- main --------------------------------------
if __name__ == "__main__":
    key = jax.random.PRNGKey(0)
    k_x, k_p = jax.random.split(key)

    params = make_params(k_p)
    prep = prepare_params(params, batch=BATCH)

    x = jax.random.normal(k_x, (BATCH, SEQ_LEN, D_MODEL), jnp.float32)
    # key_padding_mask: True = ignore that key position
    padding_mask = jnp.array([[False, False, False, True],
                              [False, False, True,  True]], dtype=bool)

    out = jax.block_until_ready(temporal_transformer(x, padding_mask, prep))
    ref = jax.block_until_ready(reference(x, padding_mask, prep))

    # Both paths use identical folded bf16 weights, the same bf16-activation matmul
    # path and f32 accumulation; the tolerance budgets the approximate EUP
    # reciprocal in the kernel's softmax denominator and the dropped max-sub.
    np.testing.assert_allclose(np.asarray(out), np.asarray(ref), rtol=5e-3, atol=5e-3)

    print("KERNEL_OK")
</pallas_src>

<mosaic_0001>
module attributes {stable_mosaic.version = 11 : i64} {
  func.func @_tt_kernel(%arg0: i32, %arg1: memref<8x128xf32, #tpu.memory_space<vmem>>, %arg2: memref<1x8xf32, #tpu.memory_space<vmem>>, %arg3: memref<8x8xf32, #tpu.memory_space<vmem>>, %arg4: memref<2x8xf32, #tpu.memory_space<vmem>>, %arg5: memref<128x128xbf16, #tpu.memory_space<vmem>>, %arg6: memref<8x128xf32, #tpu.memory_space<vmem>>, %arg7: memref<2x1x128xf32, #tpu.memory_space<vmem>>, %arg8: memref<2x1x128xf32, #tpu.memory_space<vmem>>, %arg9: memref<2x1x128xf32, #tpu.memory_space<vmem>>, %arg10: memref<2x1x128xf32, #tpu.memory_space<vmem>>, %arg11: memref<2x128x512xbf16, #tpu.memory_space<vmem>>, %arg12: memref<2x1x512xf32, #tpu.memory_space<vmem>>, %arg13: memref<2x1x128xf32, #tpu.memory_space<vmem>>, %arg14: memref<2x128x128xbf16, #tpu.memory_space<vmem>>, %arg15: memref<2x1x128xf32, #tpu.memory_space<vmem>>, %arg16: memref<2x128x128xbf16, #tpu.memory_space<vmem>>, %arg17: memref<2x1x128xf32, #tpu.memory_space<vmem>>, %arg18: memref<1x128xf32, #tpu.memory_space<vmem>>, %arg19: memref<1x128xf32, #tpu.memory_space<vmem>>, %arg20: memref<2x128xf32, #tpu.memory_space<vmem>>) attributes {dimension_semantics = [#tpu.dimension_semantics<arbitrary>], iteration_bounds = array<i64: 1>, scalar_prefetch = 0 : i64, scratch_operands = 0 : i64, tpu.core_type = #tpu.core_type<tc>, window_params = [{pipeline_mode = #tpu.pipeline_mode<synchronous>, transform_indices = @transform_0, window_bounds = array<i64: 8, 128>}, {pipeline_mode = #tpu.pipeline_mode<synchronous>, transform_indices = @transform_1, window_bounds = array<i64: 1, 8>}, {pipeline_mode = #tpu.pipeline_mode<synchronous>, transform_indices = @transform_2, window_bounds = array<i64: 8, 8>}, {pipeline_mode = #tpu.pipeline_mode<synchronous>, transform_indices = @transform_3, window_bounds = array<i64: 2, 8>}, {pipeline_mode = #tpu.pipeline_mode<synchronous>, transform_indices = @transform_4, window_bounds = array<i64: 128, 128>}, {pipeline_mode = #tpu.pipeline_mode<synchronous>, transform_indices = @transform_5, window_bounds = array<i64: 8, 128>}, {pipeline_mode = #tpu.pipeline_mode<synchronous>, transform_indices = @transform_6, window_bounds = array<i64: 2, 1, 128>}, {pipeline_mode = #tpu.pipeline_mode<synchronous>, transform_indices = @transform_7, window_bounds = array<i64: 2, 1, 128>}, {pipeline_mode = #tpu.pipeline_mode<synchronous>, transform_indices = @transform_8, window_bounds = array<i64: 2, 1, 128>}, {pipeline_mode = #tpu.pipeline_mode<synchronous>, transform_indices = @transform_9, window_bounds = array<i64: 2, 1, 128>}, {pipeline_mode = #tpu.pipeline_mode<synchronous>, transform_indices = @transform_10, window_bounds = array<i64: 2, 128, 512>}, {pipeline_mode = #tpu.pipeline_mode<synchronous>, transform_indices = @transform_11, window_bounds = array<i64: 2, 1, 512>}, {pipeline_mode = #tpu.pipeline_mode<synchronous>, transform_indices = @transform_12, window_bounds = array<i64: 2, 1, 128>}, {pipeline_mode = #tpu.pipeline_mode<synchronous>, transform_indices = @transform_13, window_bounds = array<i64: 2, 128, 128>}, {pipeline_mode = #tpu.pipeline_mode<synchronous>, transform_indices = @transform_14, window_bounds = array<i64: 2, 1, 128>}, {pipeline_mode = #tpu.pipeline_mode<synchronous>, transform_indices = @transform_15, window_bounds = array<i64: 2, 128, 128>}, {pipeline_mode = #tpu.pipeline_mode<synchronous>, transform_indices = @transform_16, window_bounds = array<i64: 2, 1, 128>}, {pipeline_mode = #tpu.pipeline_mode<synchronous>, transform_indices = @transform_17, window_bounds = array<i64: 1, 128>}, {pipeline_mode = #tpu.pipeline_mode<synchronous>, transform_indices = @transform_18, window_bounds = array<i64: 1, 128>}, {pipeline_mode = #tpu.pipeline_mode<synchronous>, transform_indices = @transform_19, window_bounds = array<i64: 2, 128>}]} {
    %c0 = arith.constant 0 : index
    %c0_0 = arith.constant 0 : index
    %0 = vector.load %arg1[%c0, %c0_0] : memref<8x128xf32, #tpu.memory_space<vmem>>, vector<8x128xf32>
    %c0_1 = arith.constant 0 : index
    %c0_2 = arith.constant 0 : index
    %1 = vector.load %arg3[%c0_1, %c0_2] : memref<8x8xf32, #tpu.memory_space<vmem>>, vector<8x8xf32>
    %c0_3 = arith.constant 0 : index
    %c0_4 = arith.constant 0 : index
    %2 = vector.load %arg2[%c0_3, %c0_4] : memref<1x8xf32, #tpu.memory_space<vmem>>, vector<1x8xf32>
    %3 = vector.broadcast %2 : vector<1x8xf32> to vector<8x8xf32>
    %4 = arith.addf %1, %3 : vector<8x8xf32>
    %5 = arith.truncf %0 : vector<8x128xf32> to vector<8x128xbf16>
    %c0_5 = arith.constant 0 : index
    %c0_6 = arith.constant 0 : index
    %6 = vector.load %arg5[%c0_5, %c0_6] : memref<128x128xbf16, #tpu.memory_space<vmem>>, vector<128x128xbf16>
    %cst = arith.constant dense<0.000000e+00> : vector<8x128xf32>
    %7 = tpu.matmul %5, %6, %cst {dimension_numbers = #tpu.dot_dimension_numbers<[1], [0], [0], [1], [0, 0, 1, 1], [], []>} : vector<8x128xbf16>, vector<128x128xbf16>, vector<8x128xf32> -> vector<8x128xf32>
    %c0_7 = arith.constant 0 : index
    %c0_8 = arith.constant 0 : index
    %8 = vector.load %arg6[%c0_7, %c0_8] : memref<8x128xf32, #tpu.memory_space<vmem>>, vector<8x128xf32>
    %9 = arith.addf %7, %8 : vector<8x128xf32>
    %c0_9 = arith.constant 0 : index
    %c0_10 = arith.constant 0 : index
    %c0_11 = arith.constant 0 : index
    %10 = vector.load %arg7[%c0_9, %c0_10, %c0_11] : memref<2x1x128xf32, #tpu.memory_space<vmem>>, vector<1x1x128xf32>
    %11 = vector.shape_cast %10 : vector<1x1x128xf32> to vector<1x128xf32>
    %c0_12 = arith.constant 0 : index
    %c0_13 = arith.constant 0 : index
    %c0_14 = arith.constant 0 : index
    %12 = vector.load %arg8[%c0_12, %c0_13, %c0_14] : memref<2x1x128xf32, #tpu.memory_space<vmem>>, vector<1x1x128xf32>
    %13 = vector.shape_cast %12 : vector<1x1x128xf32> to vector<1x128xf32>
    %cst_15 = arith.constant dense<0.000000e+00> : vector<8xf32>
    %14 = vector.multi_reduction <add>, %9, %cst_15 [1] : vector<8x128xf32> to vector<8xf32>
    %15 = vector.shape_cast %14 : vector<8xf32> to vector<8x1xf32>
    %cst_16 = arith.constant 1.280000e+02 : f32
    %16 = vector.broadcast %cst_16 : f32 to vector<8x1xf32>
    %17 = arith.divf %15, %16 : vector<8x1xf32>
    %18 = arith.mulf %9, %9 : vector<8x128xf32>
    %cst_17 = arith.constant dense<0.000000e+00> : vector<8xf32>
    %19 = vector.multi_reduction <add>, %18, %cst_17 [1] : vector<8x128xf32> to vector<8xf32>
    %20 = vector.shape_cast %19 : vector<8xf32> to vector<8x1xf32>
    %cst_18 = arith.constant 1.280000e+02 : f32
    %21 = vector.broadcast %cst_18 : f32 to vector<8x1xf32>
    %22 = arith.divf %20, %21 : vector<8x1xf32>
    %23 = arith.mulf %17, %17 : vector<8x1xf32>
    %24 = arith.subf %22, %23 : vector<8x1xf32>
    %25 = vector.broadcast %17 : vector<8x1xf32> to vector<8x128xf32>
    %26 = arith.subf %9, %25 : vector<8x128xf32>
    %cst_19 = arith.constant 9.99999974E-6 : f32
    %27 = vector.broadcast %cst_19 : f32 to vector<8x1xf32>
    %28 = arith.addf %24, %27 : vector<8x1xf32>
    %29 = math.rsqrt %28 : vector<8x1xf32>
    %30 = vector.broadcast %29 : vector<8x1xf32> to vector<8x128xf32>
    %31 = arith.mulf %26, %30 : vector<8x128xf32>
    %32 = vector.broadcast %11 : vector<1x128xf32> to vector<8x128xf32>
    %33 = arith.mulf %31, %32 : vector<8x128xf32>
    %34 = vector.broadcast %13 : vector<1x128xf32> to vector<8x128xf32>
    %35 = arith.addf %33, %34 : vector<8x128xf32>
    %36 = arith.truncf %35 : vector<8x128xf32> to vector<8x128xbf16>
    %c0_20 = arith.constant 0 : index
    %c0_21 = arith.constant 0 : index
    %c0_22 = arith.constant 0 : index
    %37 = vector.load %arg11[%c0_20, %c0_21, %c0_22] : memref<2x128x512xbf16, #tpu.memory_space<vmem>>, vector<1x128x512xbf16>
    %38 = vector.shape_cast %37 : vector<1x128x512xbf16> to vector<128x512xbf16>
    %cst_23 = arith.constant dense<0.000000e+00> : vector<8x512xf32>
    %39 = tpu.matmul %36, %38, %cst_23 {dimension_numbers = #tpu.dot_dimension_numbers<[1], [0], [0], [1], [0, 0, 1, 1], [], []>} : vector<8x128xbf16>, vector<128x512xbf16>, vector<8x512xf32> -> vector<8x512xf32>
    %c0_24 = arith.constant 0 : index
    %c0_25 = arith.constant 0 : index
    %c0_26 = arith.constant 0 : index
    %40 = vector.load %arg12[%c0_24, %c0_25, %c0_26] : memref<2x1x512xf32, #tpu.memory_space<vmem>>, vector<1x1x512xf32>
    %41 = vector.shape_cast %40 : vector<1x1x512xf32> to vector<1x512xf32>
    %42 = vector.broadcast %41 : vector<1x512xf32> to vector<8x512xf32>
    %43 = arith.addf %39, %42 : vector<8x512xf32>
    %44 = vector.extract_strided_slice %43 {offsets = [0, 0], sizes = [8, 64], strides = [1, 1]} : vector<8x512xf32> to vector<8x64xf32>
    %45 = vector.extract_strided_slice %43 {offsets = [0, 128], sizes = [8, 64], strides = [1, 1]} : vector<8x512xf32> to vector<8x64xf32>
    %46 = vector.extract_strided_slice %43 {offsets = [0, 256], sizes = [8, 128], strides = [1, 1]} : vector<8x512xf32> to vector<8x128xf32>
    %cst_27 = arith.constant dense<0.000000e+00> : vector<8x8xf32>
    %47 = tpu.matmul %44, %45, %cst_27 {dimension_numbers = #tpu.dot_dimension_numbers<[1], [1], [0], [0], [0, 0, 1, 0], [], []>} : vector<8x64xf32>, vector<8x64xf32>, vector<8x8xf32> -> vector<8x8xf32>
    %48 = arith.addf %47, %4 : vector<8x8xf32>
    %49 = math.exp %48 : vector<8x8xf32>
    %cst_28 = arith.constant dense<0.000000e+00> : vector<8xf32>
    %50 = vector.multi_reduction <add>, %49, %cst_28 [1] : vector<8x8xf32> to vector<8xf32>
    %51 = vector.shape_cast %50 : vector<8xf32> to vector<8x1xf32>
    %52 = tpu.reciprocal %51 {approx = true} : vector<8x1xf32> -> vector<8x1xf32>
    %53 = vector.broadcast %52 : vector<8x1xf32> to vector<8x8xf32>
    %54 = arith.mulf %49, %53 : vector<8x8xf32>
    %cst_29 = arith.constant dense<0.000000e+00> : vector<8x128xf32>
    %55 = tpu.matmul %54, %46, %cst_29 {dimension_numbers = #tpu.dot_dimension_numbers<[1], [0], [0], [1], [0, 0, 1, 1], [], []>} : vector<8x8xf32>, vector<8x128xf32>, vector<8x128xf32> -> vector<8x128xf32>
    %56 = vector.extract_strided_slice %43 {offsets = [0, 64], sizes = [8, 64], strides = [1, 1]} : vector<8x512xf32> to vector<8x64xf32>
    %57 = vector.extract_strided_slice %43 {offsets = [0, 192], sizes = [8, 64], strides = [1, 1]} : vector<8x512xf32> to vector<8x64xf32>
    %58 = vector.extract_strided_slice %43 {offsets = [0, 384], sizes = [8, 128], strides = [1, 1]} : vector<8x512xf32> to vector<8x128xf32>
    %cst_30 = arith.constant dense<0.000000e+00> : vector<8x8xf32>
    %59 = tpu.matmul %56, %57, %cst_30 {dimension_numbers = #tpu.dot_dimension_numbers<[1], [1], [0], [0], [0, 0, 1, 0], [], []>} : vector<8x64xf32>, vector<8x64xf32>, vector<8x8xf32> -> vector<8x8xf32>
    %60 = arith.addf %59, %4 : vector<8x8xf32>
    %61 = math.exp %60 : vector<8x8xf32>
    %cst_31 = arith.constant dense<0.000000e+00> : vector<8xf32>
    %62 = vector.multi_reduction <add>, %61, %cst_31 [1] : vector<8x8xf32> to vector<8xf32>
    %63 = vector.shape_cast %62 : vector<8xf32> to vector<8x1xf32>
    %64 = tpu.reciprocal %63 {approx = true} : vector<8x1xf32> -> vector<8x1xf32>
    %65 = vector.broadcast %64 : vector<8x1xf32> to vector<8x8xf32>
    %66 = arith.mulf %61, %65 : vector<8x8xf32>
    %cst_32 = arith.constant dense<0.000000e+00> : vector<8x128xf32>
    %67 = tpu.matmul %66, %58, %cst_32 {dimension_numbers = #tpu.dot_dimension_numbers<[1], [0], [0], [1], [0, 0, 1, 1], [], []>} : vector<8x8xf32>, vector<8x128xf32>, vector<8x128xf32> -> vector<8x128xf32>
    %68 = arith.addf %55, %67 : vector<8x128xf32>
    %69 = arith.addf %9, %68 : vector<8x128xf32>
    %c0_33 = arith.constant 0 : index
    %c0_34 = arith.constant 0 : index
    %c0_35 = arith.constant 0 : index
    %70 = vector.load %arg13[%c0_33, %c0_34, %c0_35] : memref<2x1x128xf32, #tpu.memory_space<vmem>>, vector<1x1x128xf32>
    %71 = vector.shape_cast %70 : vector<1x1x128xf32> to vector<1x128xf32>
    %72 = vector.broadcast %71 : vector<1x128xf32> to vector<8x128xf32>
    %73 = arith.addf %69, %72 : vector<8x128xf32>
    %c0_36 = arith.constant 0 : index
    %c0_37 = arith.constant 0 : index
    %c0_38 = arith.constant 0 : index
    %74 = vector.load %arg9[%c0_36, %c0_37, %c0_38] : memref<2x1x128xf32, #tpu.memory_space<vmem>>, vector<1x1x128xf32>
    %75 = vector.shape_cast %74 : vector<1x1x128xf32> to vector<1x128xf32>
    %c0_39 = arith.constant 0 : index
    %c0_40 = arith.constant 0 : index
    %c0_41 = arith.constant 0 : index
    %76 = vector.load %arg10[%c0_39, %c0_40, %c0_41] : memref<2x1x128xf32, #tpu.memory_space<vmem>>, vector<1x1x128xf32>
    %77 = vector.shape_cast %76 : vector<1x1x128xf32> to vector<1x128xf32>
    %cst_42 = arith.constant dense<0.000000e+00> : vector<8xf32>
    %78 = vector.multi_reduction <add>, %73, %cst_42 [1] : vector<8x128xf32> to vector<8xf32>
    %79 = vector.shape_cast %78 : vector<8xf32> to vector<8x1xf32>
    %cst_43 = arith.constant 1.280000e+02 : f32
    %80 = vector.broadcast %cst_43 : f32 to vector<8x1xf32>
    %81 = arith.divf %79, %80 : vector<8x1xf32>
    %82 = arith.mulf %73, %73 : vector<8x128xf32>
    %cst_44 = arith.constant dense<0.000000e+00> : vector<8xf32>
    %83 = vector.multi_reduction <add>, %82, %cst_44 [1] : vector<8x128xf32> to vector<8xf32>
    %84 = vector.shape_cast %83 : vector<8xf32> to vector<8x1xf32>
    %cst_45 = arith.constant 1.280000e+02 : f32
    %85 = vector.broadcast %cst_45 : f32 to vector<8x1xf32>
    %86 = arith.divf %84, %85 : vector<8x1xf32>
    %87 = arith.mulf %81, %81 : vector<8x1xf32>
    %88 = arith.subf %86, %87 : vector<8x1xf32>
    %89 = vector.broadcast %81 : vector<8x1xf32> to vector<8x128xf32>
    %90 = arith.subf %73, %89 : vector<8x128xf32>
    %cst_46 = arith.constant 9.99999974E-6 : f32
    %91 = vector.broadcast %cst_46 : f32 to vector<8x1xf32>
    %92 = arith.addf %88, %91 : vector<8x1xf32>
    %93 = math.rsqrt %92 : vector<8x1xf32>
    %94 = vector.broadcast %93 : vector<8x1xf32> to vector<8x128xf32>
    %95 = arith.mulf %90, %94 : vector<8x128xf32>
    %96 = vector.broadcast %75 : vector<1x128xf32> to vector<8x128xf32>
    %97 = arith.mulf %95, %96 : vector<8x128xf32>
    %98 = vector.broadcast %77 : vector<1x128xf32> to vector<8x128xf32>
    %99 = arith.addf %97, %98 : vector<8x128xf32>
    %100 = arith.truncf %99 : vector<8x128xf32> to vector<8x128xbf16>
    %c0_47 = arith.constant 0 : index
    %c0_48 = arith.constant 0 : index
    %c0_49 = arith.constant 0 : index
    %101 = vector.load %arg14[%c0_47, %c0_48, %c0_49] : memref<2x128x128xbf16, #tpu.memory_space<vmem>>, vector<1x128x128xbf16>
    %102 = vector.shape_cast %101 : vector<1x128x128xbf16> to vector<128x128xbf16>
    %cst_50 = arith.constant dense<0.000000e+00> : vector<8x128xf32>
    %103 = tpu.matmul %100, %102, %cst_50 {dimension_numbers = #tpu.dot_dimension_numbers<[1], [0], [0], [1], [0, 0, 1, 1], [], []>} : vector<8x128xbf16>, vector<128x128xbf16>, vector<8x128xf32> -> vector<8x128xf32>
    %c0_51 = arith.constant 0 : index
    %c0_52 = arith.constant 0 : index
    %c0_53 = arith.constant 0 : index
    %104 = vector.load %arg15[%c0_51, %c0_52, %c0_53] : memref<2x1x128xf32, #tpu.memory_space<vmem>>, vector<1x1x128xf32>
    %105 = vector.shape_cast %104 : vector<1x1x128xf32> to vector<1x128xf32>
    %106 = vector.broadcast %105 : vector<1x128xf32> to vector<8x128xf32>
    %107 = arith.addf %103, %106 : vector<8x128xf32>
    %cst_54 = arith.constant 0.000000e+00 : f32
    %108 = vector.broadcast %cst_54 : f32 to vector<8x128xf32>
    %109 = arith.maximumf %107, %108 : vector<8x128xf32>
    %110 = arith.truncf %109 : vector<8x128xf32> to vector<8x128xbf16>
    %c0_55 = arith.constant 0 : index
    %c0_56 = arith.constant 0 : index
    %c0_57 = arith.constant 0 : index
    %111 = vector.load %arg16[%c0_55, %c0_56, %c0_57] : memref<2x128x128xbf16, #tpu.memory_space<vmem>>, vector<1x128x128xbf16>
    %112 = vector.shape_cast %111 : vector<1x128x128xbf16> to vector<128x128xbf16>
    %cst_58 = arith.constant dense<0.000000e+00> : vector<8x128xf32>
    %113 = tpu.matmul %110, %112, %cst_58 {dimension_numbers = #tpu.dot_dimension_numbers<[1], [0], [0], [1], [0, 0, 1, 1], [], []>} : vector<8x128xbf16>, vector<128x128xbf16>, vector<8x128xf32> -> vector<8x128xf32>
    %c0_59 = arith.constant 0 : index
    %c0_60 = arith.constant 0 : index
    %c0_61 = arith.constant 0 : index
    %114 = vector.load %arg17[%c0_59, %c0_60, %c0_61] : memref<2x1x128xf32, #tpu.memory_space<vmem>>, vector<1x1x128xf32>
    %115 = vector.shape_cast %114 : vector<1x1x128xf32> to vector<1x128xf32>
    %116 = vector.broadcast %115 : vector<1x128xf32> to vector<8x128xf32>
    %117 = arith.addf %113, %116 : vector<8x128xf32>
    %118 = arith.addf %73, %117 : vector<8x128xf32>
    %c1 = arith.constant 1 : index
    %c0_62 = arith.constant 0 : index
    %c0_63 = arith.constant 0 : index
    %119 = vector.load %arg7[%c1, %c0_62, %c0_63] : memref<2x1x128xf32, #tpu.memory_space<vmem>>, vector<1x1x128xf32>
    %120 = vector.shape_cast %119 : vector<1x1x128xf32> to vector<1x128xf32>
    %c1_64 = arith.constant 1 : index
    %c0_65 = arith.constant 0 : index
    %c0_66 = arith.constant 0 : index
    %121 = vector.load %arg8[%c1_64, %c0_65, %c0_66] : memref<2x1x128xf32, #tpu.memory_space<vmem>>, vector<1x1x128xf32>
    %122 = vector.shape_cast %121 : vector<1x1x128xf32> to vector<1x128xf32>
    %cst_67 = arith.constant dense<0.000000e+00> : vector<8xf32>
    %123 = vector.multi_reduction <add>, %118, %cst_67 [1] : vector<8x128xf32> to vector<8xf32>
    %124 = vector.shape_cast %123 : vector<8xf32> to vector<8x1xf32>
    %cst_68 = arith.constant 1.280000e+02 : f32
    %125 = vector.broadcast %cst_68 : f32 to vector<8x1xf32>
    %126 = arith.divf %124, %125 : vector<8x1xf32>
    %127 = arith.mulf %118, %118 : vector<8x128xf32>
    %cst_69 = arith.constant dense<0.000000e+00> : vector<8xf32>
    %128 = vector.multi_reduction <add>, %127, %cst_69 [1] : vector<8x128xf32> to vector<8xf32>
    %129 = vector.shape_cast %128 : vector<8xf32> to vector<8x1xf32>
    %cst_70 = arith.constant 1.280000e+02 : f32
    %130 = vector.broadcast %cst_70 : f32 to vector<8x1xf32>
    %131 = arith.divf %129, %130 : vector<8x1xf32>
    %132 = arith.mulf %126, %126 : vector<8x1xf32>
    %133 = arith.subf %131, %132 : vector<8x1xf32>
    %134 = vector.broadcast %126 : vector<8x1xf32> to vector<8x128xf32>
    %135 = arith.subf %118, %134 : vector<8x128xf32>
    %cst_71 = arith.constant 9.99999974E-6 : f32
    %136 = vector.broadcast %cst_71 : f32 to vector<8x1xf32>
    %137 = arith.addf %133, %136 : vector<8x1xf32>
    %138 = math.rsqrt %137 : vector<8x1xf32>
    %139 = vector.broadcast %138 : vector<8x1xf32> to vector<8x128xf32>
    %140 = arith.mulf %135, %139 : vector<8x128xf32>
    %141 = vector.broadcast %120 : vector<1x128xf32> to vector<8x128xf32>
    %142 = arith.mulf %140, %141 : vector<8x128xf32>
    %143 = vector.broadcast %122 : vector<1x128xf32> to vector<8x128xf32>
    %144 = arith.addf %142, %143 : vector<8x128xf32>
    %145 = arith.truncf %144 : vector<8x128xf32> to vector<8x128xbf16>
    %c1_72 = arith.constant 1 : index
    %c0_73 = arith.constant 0 : index
    %c0_74 = arith.constant 0 : index
    %146 = vector.load %arg11[%c1_72, %c0_73, %c0_74] : memref<2x128x512xbf16, #tpu.memory_space<vmem>>, vector<1x128x512xbf16>
    %147 = vector.shape_cast %146 : vector<1x128x512xbf16> to vector<128x512xbf16>
    %cst_75 = arith.constant dense<0.000000e+00> : vector<8x512xf32>
    %148 = tpu.matmul %145, %147, %cst_75 {dimension_numbers = #tpu.dot_dimension_numbers<[1], [0], [0], [1], [0, 0, 1, 1], [], []>} : vector<8x128xbf16>, vector<128x512xbf16>, vector<8x512xf32> -> vector<8x512xf32>
    %c1_76 = arith.constant 1 : index
    %c0_77 = arith.constant 0 : index
    %c0_78 = arith.constant 0 : index
    %149 = vector.load %arg12[%c1_76, %c0_77, %c0_78] : memref<2x1x512xf32, #tpu.memory_space<vmem>>, vector<1x1x512xf32>
    %150 = vector.shape_cast %149 : vector<1x1x512xf32> to vector<1x512xf32>
    %151 = vector.broadcast %150 : vector<1x512xf32> to vector<8x512xf32>
    %152 = arith.addf %148, %151 : vector<8x512xf32>
    %153 = vector.extract_strided_slice %152 {offsets = [0, 0], sizes = [8, 64], strides = [1, 1]} : vector<8x512xf32> to vector<8x64xf32>
    %154 = vector.extract_strided_slice %152 {offsets = [0, 128], sizes = [8, 64], strides = [1, 1]} : vector<8x512xf32> to vector<8x64xf32>
    %155 = vector.extract_strided_slice %152 {offsets = [0, 256], sizes = [8, 128], strides = [1, 1]} : vector<8x512xf32> to vector<8x128xf32>
    %cst_79 = arith.constant dense<0.000000e+00> : vector<8x8xf32>
    %156 = tpu.matmul %153, %154, %cst_79 {dimension_numbers = #tpu.dot_dimension_numbers<[1], [1], [0], [0], [0, 0, 1, 0], [], []>} : vector<8x64xf32>, vector<8x64xf32>, vector<8x8xf32> -> vector<8x8xf32>
    %157 = arith.addf %156, %4 : vector<8x8xf32>
    %158 = math.exp %157 : vector<8x8xf32>
    %cst_80 = arith.constant dense<0.000000e+00> : vector<8xf32>
    %159 = vector.multi_reduction <add>, %158, %cst_80 [1] : vector<8x8xf32> to vector<8xf32>
    %160 = vector.shape_cast %159 : vector<8xf32> to vector<8x1xf32>
    %161 = tpu.reciprocal %160 {approx = true} : vector<8x1xf32> -> vector<8x1xf32>
    %162 = vector.broadcast %161 : vector<8x1xf32> to vector<8x8xf32>
    %163 = arith.mulf %158, %162 : vector<8x8xf32>
    %cst_81 = arith.constant dense<0.000000e+00> : vector<8x128xf32>
    %164 = tpu.matmul %163, %155, %cst_81 {dimension_numbers = #tpu.dot_dimension_numbers<[1], [0], [0], [1], [0, 0, 1, 1], [], []>} : vector<8x8xf32>, vector<8x128xf32>, vector<8x128xf32> -> vector<8x128xf32>
    %165 = vector.extract_strided_slice %152 {offsets = [0, 64], sizes = [8, 64], strides = [1, 1]} : vector<8x512xf32> to vector<8x64xf32>
    %166 = vector.extract_strided_slice %152 {offsets = [0, 192], sizes = [8, 64], strides = [1, 1]} : vector<8x512xf32> to vector<8x64xf32>
    %167 = vector.extract_strided_slice %152 {offsets = [0, 384], sizes = [8, 128], strides = [1, 1]} : vector<8x512xf32> to vector<8x128xf32>
    %cst_82 = arith.constant dense<0.000000e+00> : vector<8x8xf32>
    %168 = tpu.matmul %165, %166, %cst_82 {dimension_numbers = #tpu.dot_dimension_numbers<[1], [1], [0], [0], [0, 0, 1, 0], [], []>} : vector<8x64xf32>, vector<8x64xf32>, vector<8x8xf32> -> vector<8x8xf32>
    %169 = arith.addf %168, %4 : vector<8x8xf32>
    %170 = math.exp %169 : vector<8x8xf32>
    %cst_83 = arith.constant dense<0.000000e+00> : vector<8xf32>
    %171 = vector.multi_reduction <add>, %170, %cst_83 [1] : vector<8x8xf32> to vector<8xf32>
    %172 = vector.shape_cast %171 : vector<8xf32> to vector<8x1xf32>
    %173 = tpu.reciprocal %172 {approx = true} : vector<8x1xf32> -> vector<8x1xf32>
    %174 = vector.broadcast %173 : vector<8x1xf32> to vector<8x8xf32>
    %175 = arith.mulf %170, %174 : vector<8x8xf32>
    %cst_84 = arith.constant dense<0.000000e+00> : vector<8x128xf32>
    %176 = tpu.matmul %175, %167, %cst_84 {dimension_numbers = #tpu.dot_dimension_numbers<[1], [0], [0], [1], [0, 0, 1, 1], [], []>} : vector<8x8xf32>, vector<8x128xf32>, vector<8x128xf32> -> vector<8x128xf32>
    %177 = arith.addf %164, %176 : vector<8x128xf32>
    %178 = arith.addf %118, %177 : vector<8x128xf32>
    %c1_85 = arith.constant 1 : index
    %c0_86 = arith.constant 0 : index
    %c0_87 = arith.constant 0 : index
    %179 = vector.load %arg13[%c1_85, %c0_86, %c0_87] : memref<2x1x128xf32, #tpu.memory_space<vmem>>, vector<1x1x128xf32>
    %180 = vector.shape_cast %179 : vector<1x1x128xf32> to vector<1x128xf32>
    %181 = vector.broadcast %180 : vector<1x128xf32> to vector<8x128xf32>
    %182 = arith.addf %178, %181 : vector<8x128xf32>
    %c1_88 = arith.constant 1 : index
    %c0_89 = arith.constant 0 : index
    %c0_90 = arith.constant 0 : index
    %183 = vector.load %arg9[%c1_88, %c0_89, %c0_90] : memref<2x1x128xf32, #tpu.memory_space<vmem>>, vector<1x1x128xf32>
    %184 = vector.shape_cast %183 : vector<1x1x128xf32> to vector<1x128xf32>
    %c1_91 = arith.constant 1 : index
    %c0_92 = arith.constant 0 : index
    %c0_93 = arith.constant 0 : index
    %185 = vector.load %arg10[%c1_91, %c0_92, %c0_93] : memref<2x1x128xf32, #tpu.memory_space<vmem>>, vector<1x1x128xf32>
    %186 = vector.shape_cast %185 : vector<1x1x128xf32> to vector<1x128xf32>
    %cst_94 = arith.constant dense<0.000000e+00> : vector<8xf32>
    %187 = vector.multi_reduction <add>, %182, %cst_94 [1] : vector<8x128xf32> to vector<8xf32>
    %188 = vector.shape_cast %187 : vector<8xf32> to vector<8x1xf32>
    %cst_95 = arith.constant 1.280000e+02 : f32
    %189 = vector.broadcast %cst_95 : f32 to vector<8x1xf32>
    %190 = arith.divf %188, %189 : vector<8x1xf32>
    %191 = arith.mulf %182, %182 : vector<8x128xf32>
    %cst_96 = arith.constant dense<0.000000e+00> : vector<8xf32>
    %192 = vector.multi_reduction <add>, %191, %cst_96 [1] : vector<8x128xf32> to vector<8xf32>
    %193 = vector.shape_cast %192 : vector<8xf32> to vector<8x1xf32>
    %cst_97 = arith.constant 1.280000e+02 : f32
    %194 = vector.broadcast %cst_97 : f32 to vector<8x1xf32>
    %195 = arith.divf %193, %194 : vector<8x1xf32>
    %196 = arith.mulf %190, %190 : vector<8x1xf32>
    %197 = arith.subf %195, %196 : vector<8x1xf32>
    %198 = vector.broadcast %190 : vector<8x1xf32> to vector<8x128xf32>
    %199 = arith.subf %182, %198 : vector<8x128xf32>
    %cst_98 = arith.constant 9.99999974E-6 : f32
    %200 = vector.broadcast %cst_98 : f32 to vector<8x1xf32>
    %201 = arith.addf %197, %200 : vector<8x1xf32>
    %202 = math.rsqrt %201 : vector<8x1xf32>
    %203 = vector.broadcast %202 : vector<8x1xf32> to vector<8x128xf32>
    %204 = arith.mulf %199, %203 : vector<8x128xf32>
    %205 = vector.broadcast %184 : vector<1x128xf32> to vector<8x128xf32>
    %206 = arith.mulf %204, %205 : vector<8x128xf32>
    %207 = vector.broadcast %186 : vector<1x128xf32> to vector<8x128xf32>
    %208 = arith.addf %206, %207 : vector<8x128xf32>
    %209 = arith.truncf %208 : vector<8x128xf32> to vector<8x128xbf16>
    %c1_99 = arith.constant 1 : index
    %c0_100 = arith.constant 0 : index
    %c0_101 = arith.constant 0 : index
    %210 = vector.load %arg14[%c1_99, %c0_100, %c0_101] : memref<2x128x128xbf16, #tpu.memory_space<vmem>>, vector<1x128x128xbf16>
    %211 = vector.shape_cast %210 : vector<1x128x128xbf16> to vector<128x128xbf16>
    %cst_102 = arith.constant dense<0.000000e+00> : vector<8x128xf32>
    %212 = tpu.matmul %209, %211, %cst_102 {dimension_numbers = #tpu.dot_dimension_numbers<[1], [0], [0], [1], [0, 0, 1, 1], [], []>} : vector<8x128xbf16>, vector<128x128xbf16>, vector<8x128xf32> -> vector<8x128xf32>
    %c1_103 = arith.constant 1 : index
    %c0_104 = arith.constant 0 : index
    %c0_105 = arith.constant 0 : index
    %213 = vector.load %arg15[%c1_103, %c0_104, %c0_105] : memref<2x1x128xf32, #tpu.memory_space<vmem>>, vector<1x1x128xf32>
    %214 = vector.shape_cast %213 : vector<1x1x128xf32> to vector<1x128xf32>
    %215 = vector.broadcast %214 : vector<1x128xf32> to vector<8x128xf32>
    %216 = arith.addf %212, %215 : vector<8x128xf32>
    %cst_106 = arith.constant 0.000000e+00 : f32
    %217 = vector.broadcast %cst_106 : f32 to vector<8x128xf32>
    %218 = arith.maximumf %216, %217 : vector<8x128xf32>
    %219 = arith.truncf %218 : vector<8x128xf32> to vector<8x128xbf16>
    %c1_107 = arith.constant 1 : index
    %c0_108 = arith.constant 0 : index
    %c0_109 = arith.constant 0 : index
    %220 = vector.load %arg16[%c1_107, %c0_108, %c0_109] : memref<2x128x128xbf16, #tpu.memory_space<vmem>>, vector<1x128x128xbf16>
    %221 = vector.shape_cast %220 : vector<1x128x128xbf16> to vector<128x128xbf16>
    %cst_110 = arith.constant dense<0.000000e+00> : vector<8x128xf32>
    %222 = tpu.matmul %219, %221, %cst_110 {dimension_numbers = #tpu.dot_dimension_numbers<[1], [0], [0], [1], [0, 0, 1, 1], [], []>} : vector<8x128xbf16>, vector<128x128xbf16>, vector<8x128xf32> -> vector<8x128xf32>
    %c1_111 = arith.constant 1 : index
    %c0_112 = arith.constant 0 : index
    %c0_113 = arith.constant 0 : index
    %223 = vector.load %arg17[%c1_111, %c0_112, %c0_113] : memref<2x1x128xf32, #tpu.memory_space<vmem>>, vector<1x1x128xf32>
    %224 = vector.shape_cast %223 : vector<1x1x128xf32> to vector<1x128xf32>
    %225 = vector.broadcast %224 : vector<1x128xf32> to vector<8x128xf32>
    %226 = arith.addf %222, %225 : vector<8x128xf32>
    %227 = arith.addf %182, %226 : vector<8x128xf32>
    %c0_114 = arith.constant 0 : index
    %c0_115 = arith.constant 0 : index
    %228 = vector.load %arg4[%c0_114, %c0_115] : memref<2x8xf32, #tpu.memory_space<vmem>>, vector<2x8xf32>
    %cst_116 = arith.constant dense<0.000000e+00> : vector<2x128xf32>
    %229 = tpu.matmul %228, %227, %cst_116 {dimension_numbers = #tpu.dot_dimension_numbers<[1], [0], [0], [1], [0, 0, 1, 1], [], []>} : vector<2x8xf32>, vector<8x128xf32>, vector<2x128xf32> -> vector<2x128xf32>
    %c0_117 = arith.constant 0 : index
    %c0_118 = arith.constant 0 : index
    %230 = vector.load %arg18[%c0_117, %c0_118] : memref<1x128xf32, #tpu.memory_space<vmem>>, vector<1x128xf32>
    %c0_119 = arith.constant 0 : index
    %c0_120 = arith.constant 0 : index
    %231 = vector.load %arg19[%c0_119, %c0_120] : memref<1x128xf32, #tpu.memory_space<vmem>>, vector<1x128xf32>
    %cst_121 = arith.constant dense<0.000000e+00> : vector<2xf32>
    %232 = vector.multi_reduction <add>, %229, %cst_121 [1] : vector<2x128xf32> to vector<2xf32>
    %233 = vector.shape_cast %232 : vector<2xf32> to vector<2x1xf32>
    %cst_122 = arith.constant 1.280000e+02 : f32
    %234 = vector.broadcast %cst_122 : f32 to vector<2x1xf32>
    %235 = arith.divf %233, %234 : vector<2x1xf32>
    %236 = arith.mulf %229, %229 : vector<2x128xf32>
    %cst_123 = arith.constant dense<0.000000e+00> : vector<2xf32>
    %237 = vector.multi_reduction <add>, %236, %cst_123 [1] : vector<2x128xf32> to vector<2xf32>
    %238 = vector.shape_cast %237 : vector<2xf32> to vector<2x1xf32>
    %cst_124 = arith.constant 1.280000e+02 : f32
    %239 = vector.broadcast %cst_124 : f32 to vector<2x1xf32>
    %240 = arith.divf %238, %239 : vector<2x1xf32>
    %241 = arith.mulf %235, %235 : vector<2x1xf32>
    %242 = arith.subf %240, %241 : vector<2x1xf32>
    %243 = vector.broadcast %235 : vector<2x1xf32> to vector<2x128xf32>
    %244 = arith.subf %229, %243 : vector<2x128xf32>
    %cst_125 = arith.constant 9.99999974E-6 : f32
    %245 = vector.broadcast %cst_125 : f32 to vector<2x1xf32>
    %246 = arith.addf %242, %245 : vector<2x1xf32>
    %247 = math.rsqrt %246 : vector<2x1xf32>
    %248 = vector.broadcast %247 : vector<2x1xf32> to vector<2x128xf32>
    %249 = arith.mulf %244, %248 : vector<2x128xf32>
    %250 = vector.broadcast %230 : vector<1x128xf32> to vector<2x128xf32>
    %251 = arith.mulf %249, %250 : vector<2x128xf32>
    %252 = vector.broadcast %231 : vector<1x128xf32> to vector<2x128xf32>
    %253 = arith.addf %251, %252 : vector<2x128xf32>
    %c0_126 = arith.constant 0 : index
    %c0_127 = arith.constant 0 : index
    %254 = vector.load %arg20[%c0_126, %c0_127] : memref<2x128xf32, #tpu.memory_space<vmem>>, vector<2x128xf32>
    tpu.vector_store %arg20[%c0_126, %c0_127], %253 {strides = array<i32>} : memref<2x128xf32, #tpu.memory_space<vmem>>, vector<2x128xf32>,
    return
  }
  func.func @transform_0(%arg0: i32) -> (i32, i32) {
    %c0_i32 = arith.constant 0 : i32
    %c0_i32_0 = arith.constant 0 : i32
    %c0_i32_1 = arith.constant 0 : i32
    return %c0_i32, %c0_i32_0 : i32, i32
  }
  func.func @transform_1(%arg0: i32) -> (i32, i32) {
    %c0_i32 = arith.constant 0 : i32
    %c0_i32_0 = arith.constant 0 : i32
    %c0_i32_1 = arith.constant 0 : i32
    return %c0_i32, %c0_i32_0 : i32, i32
  }
  func.func @transform_2(%arg0: i32) -> (i32, i32) {
    %c0_i32 = arith.constant 0 : i32
    %c0_i32_0 = arith.constant 0 : i32
    %c0_i32_1 = arith.constant 0 : i32
    return %c0_i32, %c0_i32_0 : i32, i32
  }
  func.func @transform_3(%arg0: i32) -> (i32, i32) {
    %c0_i32 = arith.constant 0 : i32
    %c0_i32_0 = arith.constant 0 : i32
    %c0_i32_1 = arith.constant 0 : i32
    return %c0_i32, %c0_i32_0 : i32, i32
  }
  func.func @transform_4(%arg0: i32) -> (i32, i32) {
    %c0_i32 = arith.constant 0 : i32
    %c0_i32_0 = arith.constant 0 : i32
    %c0_i32_1 = arith.constant 0 : i32
    return %c0_i32, %c0_i32_0 : i32, i32
  }
  func.func @transform_5(%arg0: i32) -> (i32, i32) {
    %c0_i32 = arith.constant 0 : i32
    %c0_i32_0 = arith.constant 0 : i32
    %c0_i32_1 = arith.constant 0 : i32
    return %c0_i32, %c0_i32_0 : i32, i32
  }
  func.func @transform_6(%arg0: i32) -> (i32, i32, i32) {
    %c0_i32 = arith.constant 0 : i32
    %c0_i32_0 = arith.constant 0 : i32
    %c0_i32_1 = arith.constant 0 : i32
    %c0_i32_2 = arith.constant 0 : i32
    return %c0_i32, %c0_i32_0, %c0_i32_1 : i32, i32, i32
  }
  func.func @transform_7(%arg0: i32) -> (i32, i32, i32) {
    %c0_i32 = arith.constant 0 : i32
    %c0_i32_0 = arith.constant 0 : i32
    %c0_i32_1 = arith.constant 0 : i32
    %c0_i32_2 = arith.constant 0 : i32
    return %c0_i32, %c0_i32_0, %c0_i32_1 : i32, i32, i32
  }
  func.func @transform_8(%arg0: i32) -> (i32, i32, i32) {
    %c0_i32 = arith.constant 0 : i32
    %c0_i32_0 = arith.constant 0 : i32
    %c0_i32_1 = arith.constant 0 : i32
    %c0_i32_2 = arith.constant 0 : i32
    return %c0_i32, %c0_i32_0, %c0_i32_1 : i32, i32, i32
  }
  func.func @transform_9(%arg0: i32) -> (i32, i32, i32) {
    %c0_i32 = arith.constant 0 : i32
    %c0_i32_0 = arith.constant 0 : i32
    %c0_i32_1 = arith.constant 0 : i32
    %c0_i32_2 = arith.constant 0 : i32
    return %c0_i32, %c0_i32_0, %c0_i32_1 : i32, i32, i32
  }
  func.func @transform_10(%arg0: i32) -> (i32, i32, i32) {
    %c0_i32 = arith.constant 0 : i32
    %c0_i32_0 = arith.constant 0 : i32
    %c0_i32_1 = arith.constant 0 : i32
    %c0_i32_2 = arith.constant 0 : i32
    return %c0_i32, %c0_i32_0, %c0_i32_1 : i32, i32, i32
  }
  func.func @transform_11(%arg0: i32) -> (i32, i32, i32) {
    %c0_i32 = arith.constant 0 : i32
    %c0_i32_0 = arith.constant 0 : i32
    %c0_i32_1 = arith.constant 0 : i32
    %c0_i32_2 = arith.constant 0 : i32
    return %c0_i32, %c0_i32_0, %c0_i32_1 : i32, i32, i32
  }
  func.func @transform_12(%arg0: i32) -> (i32, i32, i32) {
    %c0_i32 = arith.constant 0 : i32
    %c0_i32_0 = arith.constant 0 : i32
    %c0_i32_1 = arith.constant 0 : i32
    %c0_i32_2 = arith.constant 0 : i32
    return %c0_i32, %c0_i32_0, %c0_i32_1 : i32, i32, i32
  }
  func.func @transform_13(%arg0: i32) -> (i32, i32, i32) {
    %c0_i32 = arith.constant 0 : i32
    %c0_i32_0 = arith.constant 0 : i32
    %c0_i32_1 = arith.constant 0 : i32
    %c0_i32_2 = arith.constant 0 : i32
    return %c0_i32, %c0_i32_0, %c0_i32_1 : i32, i32, i32
  }
  func.func @transform_14(%arg0: i32) -> (i32, i32, i32) {
    %c0_i32 = arith.constant 0 : i32
    %c0_i32_0 = arith.constant 0 : i32
    %c0_i32_1 = arith.constant 0 : i32
    %c0_i32_2 = arith.constant 0 : i32
    return %c0_i32, %c0_i32_0, %c0_i32_1 : i32, i32, i32
  }
  func.func @transform_15(%arg0: i32) -> (i32, i32, i32) {
    %c0_i32 = arith.constant 0 : i32
    %c0_i32_0 = arith.constant 0 : i32
    %c0_i32_1 = arith.constant 0 : i32
    %c0_i32_2 = arith.constant 0 : i32
    return %c0_i32, %c0_i32_0, %c0_i32_1 : i32, i32, i32
  }
  func.func @transform_16(%arg0: i32) -> (i32, i32, i32) {
    %c0_i32 = arith.constant 0 : i32
    %c0_i32_0 = arith.constant 0 : i32
    %c0_i32_1 = arith.constant 0 : i32
    %c0_i32_2 = arith.constant 0 : i32
    return %c0_i32, %c0_i32_0, %c0_i32_1 : i32, i32, i32
  }
  func.func @transform_17(%arg0: i32) -> (i32, i32) {
    %c0_i32 = arith.constant 0 : i32
    %c0_i32_0 = arith.constant 0 : i32
    %c0_i32_1 = arith.constant 0 : i32
    return %c0_i32, %c0_i32_0 : i32, i32
  }
  func.func @transform_18(%arg0: i32) -> (i32, i32) {
    %c0_i32 = arith.constant 0 : i32
    %c0_i32_0 = arith.constant 0 : i32
    %c0_i32_1 = arith.constant 0 : i32
    return %c0_i32, %c0_i32_0 : i32, i32
  }
  func.func @transform_19(%arg0: i32) -> (i32, i32) {
    %c0_i32 = arith.constant 0 : i32
    %c0_i32_0 = arith.constant 0 : i32
    %c0_i32_1 = arith.constant 0 : i32
    return %c0_i32, %c0_i32_0 : i32, i32
  }
}

</mosaic_0001>

<llo_original>
// kernel: temporal_transformer.1
$region0: #{temporal_transformer.1}
  #allocation0 [shape = 'u32[]', space=smem, size = 0x4, offset = 0x4, fixed_abs, tag = 'smem constant byte address 0x4 - core index']
  #allocation1 [shape = 'u32[144,128]{1,0:T(1,128)}', space=vmem, size = 0x12000, scoped, tag = 'internal scratch']
  %s0 = inlined_call_operand.vmem [shape: f32[8,128], index: 0, kind: input, shape index: {}]
  %s1 = inlined_call_operand.vmem [shape: f32[1,8], index: 1, kind: input, shape index: {}]
  %s2 = inlined_call_operand.vmem [shape: f32[8,8], index: 2, kind: input, shape index: {}]
  %s3 = inlined_call_operand.vmem [shape: f32[2,8], index: 3, kind: input, shape index: {}]
  %s4 = inlined_call_operand.hbm [shape: bf16[128,128], index: 4, kind: input, shape index: {}]
  %s5 = inlined_call_operand.vmem [shape: f32[8,128], index: 5, kind: input, shape index: {}]
  %s6 = inlined_call_operand.vmem [shape: f32[2,1,128], index: 6, kind: input, shape index: {}]
  %s7 = inlined_call_operand.vmem [shape: f32[2,1,128], index: 7, kind: input, shape index: {}]
  %s8 = inlined_call_operand.vmem [shape: f32[2,1,128], index: 8, kind: input, shape index: {}]
  %s9 = inlined_call_operand.vmem [shape: f32[2,1,128], index: 9, kind: input, shape index: {}]
  %s10 = inlined_call_operand.hbm [shape: bf16[2,128,512], index: 10, kind: input, shape index: {}]
  %s11 = inlined_call_operand.vmem [shape: f32[2,1,512], index: 11, kind: input, shape index: {}]
  %s12 = inlined_call_operand.vmem [shape: f32[2,1,128], index: 12, kind: input, shape index: {}]
  %s13 = inlined_call_operand.hbm [shape: bf16[2,128,128], index: 13, kind: input, shape index: {}]
  %s14 = inlined_call_operand.hbm [shape: f32[2,1,128], index: 14, kind: input, shape index: {}]
  %s15 = inlined_call_operand.hbm [shape: bf16[2,128,128], index: 15, kind: input, shape index: {}]
  %s16 = inlined_call_operand.hbm [shape: f32[2,1,128], index: 16, kind: input, shape index: {}]
  %s17 = inlined_call_operand.vmem [shape: f32[1,128], index: 17, kind: input, shape index: {}]
  %s18 = inlined_call_operand.vmem [shape: f32[1,128], index: 18, kind: input, shape index: {}]
  %s19 = inlined_call_operand.hbm [shape: f32[2,128], index: 19, kind: output, shape index: {}]
  %s20 = sld [smem:[#allocation0]]
  $region110: #{temporal_transformer.1} parent=0
    _
  %s22 = ssub.s32 1, %s20
  %s23 = scalar_select 0, %s22, %s20
  $region1: #{temporal_transformer.1} parent=0
    #allocation2 [shape = 'u8[32768]{0}', space=vmem, size = 0x8000, scoped, tag = 'input window, operand 4, single buffered']
    #allocation3 [shape = 's32[1]{0}', space=sflag, size = 0x4, scoped, tag = 'scoped memory for temporal_transformer.1']
    #allocation4 [shape = 's32[1]{0}', space=sflag, size = 0x4, scoped, tag = 'scoped memory for temporal_transformer.1']
    #allocation5 [shape = 'u8[262144]{0}', space=vmem, size = 0x40000, scoped, tag = 'input window, operand 10, single buffered']
    #allocation6 [shape = 's32[1]{0}', space=sflag, size = 0x4, scoped, tag = 'scoped memory for temporal_transformer.1']
    #allocation7 [shape = 'u8[65536]{0}', space=vmem, size = 0x10000, scoped, tag = 'input window, operand 13, single buffered']
    #allocation8 [shape = 'u8[1024]{0}', space=vmem, size = 0x400, scoped, tag = 'input window, operand 14, single buffered']
    #allocation9 [shape = 's32[1]{0}', space=sflag, size = 0x4, scoped, tag = 'scoped memory for temporal_transformer.1']
    #allocation10 [shape = 'u8[65536]{0}', space=vmem, size = 0x10000, scoped, tag = 'input window, operand 15, single buffered']
    #allocation11 [shape = 'u8[1024]{0}', space=vmem, size = 0x400, scoped, tag = 'input window, operand 16, single buffered']
    #allocation12 [shape = 's32[1]{0}', space=sflag, size = 0x4, scoped, tag = 'scoped memory for temporal_transformer.1']
    #allocation13 [shape = 'u8[1024]{0}', space=vmem, size = 0x400, scoped, tag = 'output window, operand 0, single buffered']
    %24 = vsyncpa [#allocation3], 0
    %25 = vsyncpa [#allocation6], 0
    %26 = vsyncpa [#allocation9], 0
    %27 = vsyncpa [#allocation12], 0
    %28 = vsyncpa [#allocation4], 0
    // Predicated region
    $region2: #{temporal_transformer.1} parent=1 // pred_check
      _
    $region3: #{temporal_transformer.1} parent=1 // pred_check_branch
      %30 = sbr.rel (0) target = $region5
    $region4: #{temporal_transformer.1} parent=1 // pred_region
      _
    $region5: #{temporal_transformer.1} parent=1 // pred_fallthru
      _
    // Predicated region
    $region6: #{temporal_transformer.1} parent=1 // pred_check
      _
    $region7: #{temporal_transformer.1} parent=1 // pred_check_branch
      %32 = sbr.rel (0) target = $region9
    $region8: #{temporal_transformer.1} parent=1 // pred_region
      _
    $region9: #{temporal_transformer.1} parent=1 // pred_fallthru
      _
    // Predicated region
    $region10: #{temporal_transformer.1} parent=1 // pred_check
      _
    $region11: #{temporal_transformer.1} parent=1 // pred_check_branch
      %34 = sbr.rel (0) target = $region13
    $region12: #{temporal_transformer.1} parent=1 // pred_region
      _
    $region13: #{temporal_transformer.1} parent=1 // pred_fallthru
      _
    // Predicated region
    $region14: #{temporal_transformer.1} parent=1 // pred_check
      _
    $region15: #{temporal_transformer.1} parent=1 // pred_check_branch
      %36 = sbr.rel (0) target = $region17
    $region16: #{temporal_transformer.1} parent=1 // pred_region
      _
    $region17: #{temporal_transformer.1} parent=1 // pred_fallthru
      _
    // Predicated region
    $region18: #{temporal_transformer.1} parent=1 // pred_check
      _
    $region19: #{temporal_transformer.1} parent=1 // pred_check_branch
      %38 = sbr.rel (0) target = $region21
    $region20: #{temporal_transformer.1} parent=1 // pred_region
      %s40 = ssub.s32 1024, 1024
      %41 = vsyncadd [#allocation3], %s40
      %s42 = sshll.u32 [#allocation2], 4
      %s43 = int_to_ptr.vmem [resolvable:$true] %s42
      %48 = dma.hbm_to_vmem [thread:$0]  %s4, 1024, %s43, [#allocation3], 64, 64, 4
    $region21: #{temporal_transformer.1} parent=1 // pred_fallthru
      _
    // Predicated region
    $region22: #{temporal_transformer.1} parent=1 // pred_check
      _
    $region23: #{temporal_transformer.1} parent=1 // pred_check_branch
      %50 = sbr.rel (0) target = $region25
    $region24: #{temporal_transformer.1} parent=1 // pred_region
      _
    $region25: #{temporal_transformer.1} parent=1 // pred_fallthru
      _
    // Predicated region
    $region26: #{temporal_transformer.1} parent=1 // pred_check
      _
    $region27: #{temporal_transformer.1} parent=1 // pred_check_branch
      %52 = sbr.rel (0) target = $region29
    $region28: #{temporal_transformer.1} parent=1 // pred_region
      _
    $region29: #{temporal_transformer.1} parent=1 // pred_fallthru
      _
    // Predicated region
    $region30: #{temporal_transformer.1} parent=1 // pred_check
      _
    $region31: #{temporal_transformer.1} parent=1 // pred_check_branch
      %54 = sbr.rel (0) target = $region33
    $region32: #{temporal_transformer.1} parent=1 // pred_region
      _
    $region33: #{temporal_transformer.1} parent=1 // pred_fallthru
      _
    // Predicated region
    $region34: #{temporal_transformer.1} parent=1 // pred_check
      _
    $region35: #{temporal_transformer.1} parent=1 // pred_check_branch
      %56 = sbr.rel (0) target = $region37
    $region36: #{temporal_transformer.1} parent=1 // pred_region
      _
    $region37: #{temporal_transformer.1} parent=1 // pred_fallthru
      _
    // Predicated region
    $region38: #{temporal_transformer.1} parent=1 // pred_check
      _
    $region39: #{temporal_transformer.1} parent=1 // pred_check_branch
      %58 = sbr.rel (0) target = $region41
    $region40: #{temporal_transformer.1} parent=1 // pred_region
      _
    $region41: #{temporal_transformer.1} parent=1 // pred_fallthru
      _
    // Predicated region
    $region42: #{temporal_transformer.1} parent=1 // pred_check
      _
    $region43: #{temporal_transformer.1} parent=1 // pred_check_branch
      %60 = sbr.rel (0) target = $region45
    $region44: #{temporal_transformer.1} parent=1 // pred_region
      %s62 = ssub.s32 8192, 8192
      %63 = vsyncadd [#allocation6], %s62
      %s64 = sshll.u32 [#allocation5], 4
      %s65 = int_to_ptr.vmem [resolvable:$true] %s64
      %70 = dma.hbm_to_vmem [thread:$0]  %s10, 8192, %s65, [#allocation6], 256, 256, 16
    $region45: #{temporal_transformer.1} parent=1 // pred_fallthru
      _
    // Predicated region
    $region46: #{temporal_transformer.1} parent=1 // pred_check
      _
    $region47: #{temporal_transformer.1} parent=1 // pred_check_branch
      %72 = sbr.rel (0) target = $region49
    $region48: #{temporal_transformer.1} parent=1 // pred_region
      _
    $region49: #{temporal_transformer.1} parent=1 // pred_fallthru
      _
    // Predicated region
    $region50: #{temporal_transformer.1} parent=1 // pred_check
      _
    $region51: #{temporal_transformer.1} parent=1 // pred_check_branch
      %74 = sbr.rel (0) target = $region53
    $region52: #{temporal_transformer.1} parent=1 // pred_region
      _
    $region53: #{temporal_transformer.1} parent=1 // pred_fallthru
      _
    // Predicated region
    $region54: #{temporal_transformer.1} parent=1 // pred_check
      _
    $region55: #{temporal_transformer.1} parent=1 // pred_check_branch
      %76 = sbr.rel (0) target = $region57
    $region56: #{temporal_transformer.1} parent=1 // pred_region
      %s78 = ssub.s32 2048, 2048
      %79 = vsyncadd [#allocation6], %s78
      %s80 = sshll.u32 [#allocation7], 4
      %s81 = int_to_ptr.vmem [resolvable:$true] %s80
      %86 = dma.hbm_to_vmem [thread:$0]  %s13, 2048, %s81, [#allocation6], 64, 64, 4
    $region57: #{temporal_transformer.1} parent=1 // pred_fallthru
      _
    // Predicated region
    $region58: #{temporal_transformer.1} parent=1 // pred_check
      _
    $region59: #{temporal_transformer.1} parent=1 // pred_check_branch
      %88 = sbr.rel (0) target = $region61
    $region60: #{temporal_transformer.1} parent=1 // pred_region
      %s90 = ssub.s32 32, 32
      %91 = vsyncadd [#allocation9], %s90
      %s92 = sshll.u32 [#allocation8], 4
      %s93 = int_to_ptr.vmem [resolvable:$true] %s92
      %98 = dma.hbm_to_vmem [thread:$0]  %s14, 32, %s93, [#allocation9], 16, 16, 1
    $region61: #{temporal_transformer.1} parent=1 // pred_fallthru
      _
    // Predicated region
    $region62: #{temporal_transformer.1} parent=1 // pred_check
      _
    $region63: #{temporal_transformer.1} parent=1 // pred_check_branch
      %100 = sbr.rel (0) target = $region65
    $region64: #{temporal_transformer.1} parent=1 // pred_region
      %s102 = ssub.s32 2048, 2048
      %103 = vsyncadd [#allocation9], %s102
      %s104 = sshll.u32 [#allocation10], 4
      %s105 = int_to_ptr.vmem [resolvable:$true] %s104
      %110 = dma.hbm_to_vmem [thread:$0]  %s15, 2048, %s105, [#allocation9], 64, 64, 4
    $region65: #{temporal_transformer.1} parent=1 // pred_fallthru
      _
    // Predicated region
    $region66: #{temporal_transformer.1} parent=1 // pred_check
      _
    $region67: #{temporal_transformer.1} parent=1 // pred_check_branch
      %112 = sbr.rel (0) target = $region69
    $region68: #{temporal_transformer.1} parent=1 // pred_region
      %s114 = ssub.s32 32, 32
      %115 = vsyncadd [#allocation12], %s114
      %s116 = sshll.u32 [#allocation11], 4
      %s117 = int_to_ptr.vmem [resolvable:$true] %s116
      %122 = dma.hbm_to_vmem [thread:$0]  %s16, 32, %s117, [#allocation12], 16, 16, 1
    $region69: #{temporal_transformer.1} parent=1 // pred_fallthru
      _
    // Predicated region
    $region70: #{temporal_transformer.1} parent=1 // pred_check
      _
    $region71: #{temporal_transformer.1} parent=1 // pred_check_branch
      %124 = sbr.rel (0) target = $region73
    $region72: #{temporal_transformer.1} parent=1 // pred_region
      _
    $region73: #{temporal_transformer.1} parent=1 // pred_fallthru
      _
    // Predicated region
    $region74: #{temporal_transformer.1} parent=1 // pred_check
      _
    $region75: #{temporal_transformer.1} parent=1 // pred_check_branch
      %126 = sbr.rel (0) target = $region77
    $region76: #{temporal_transformer.1} parent=1 // pred_region
      _
    $region77: #{temporal_transformer.1} parent=1 // pred_fallthru
      _
    // Predicated region
    $region78: #{temporal_transformer.1} parent=1 // pred_check
      _
    $region79: #{temporal_transformer.1} parent=1 // pred_check_branch
      %128 = sbr.rel (0) target = $region81
    $region80: #{temporal_transformer.1} parent=1 // pred_region
      %129 = dma.done [#allocation3], 1024
    $region81: #{temporal_transformer.1} parent=1 // pred_fallthru
      _
    // Predicated region
    $region82: #{temporal_transformer.1} parent=1 // pred_check
      _
    $region83: #{temporal_transformer.1} parent=1 // pred_check_branch
      %131 = sbr.rel (0) target = $region85
    $region84: #{temporal_transformer.1} parent=1 // pred_region
      %132 = dma.done [#allocation6], 8192
    $region85: #{temporal_transformer.1} parent=1 // pred_fallthru
      _
    // Predicated region
    $region86: #{temporal_transformer.1} parent=1 // pred_check
      _
    $region87: #{temporal_transformer.1} parent=1 // pred_check_branch
      %134 = sbr.rel (0) target = $region89
    $region88: #{temporal_transformer.1} parent=1 // pred_region
      %135 = dma.done [#allocation6], 2048
    $region89: #{temporal_transformer.1} parent=1 // pred_fallthru
      _
    // Predicated region
    $region90: #{temporal_transformer.1} parent=1 // pred_check
      _
    $region91: #{temporal_transformer.1} parent=1 // pred_check_branch
      %137 = sbr.rel (0) target = $region93
    $region92: #{temporal_transformer.1} parent=1 // pred_region
      %138 = dma.done [#allocation9], 32
    $region93: #{temporal_transformer.1} parent=1 // pred_fallthru
      _
    // Predicated region
    $region94: #{temporal_transformer.1} parent=1 // pred_check
      _
    $region95: #{temporal_transformer.1} parent=1 // pred_check_branch
      %140 = sbr.rel (0) target = $region97
    $region96: #{temporal_transformer.1} parent=1 // pred_region
      %141 = dma.done [#allocation9], 2048
    $region97: #{temporal_transformer.1} parent=1 // pred_fallthru
      _
    // Predicated region
    $region98: #{temporal_transformer.1} parent=1 // pred_check
      _
    $region99: #{temporal_transformer.1} parent=1 // pred_check_branch
      %143 = sbr.rel (0) target = $region101
    $region100: #{temporal_transformer.1} parent=1 // pred_region
      %144 = dma.done [#allocation12], 32
    $region101: #{temporal_transformer.1} parent=1 // pred_fallthru
      _
    %v146 = vld [vmem:[%s0] sm:$0xff]
    %v147 = vld [vmem:[%s2] sm:$0xff]
    %v148 = vld [vmem:[%s1] sm:$0x1]
    %v150 = vlaneseq
    %v151 = vshrl.u32 %v150, 7
    %v152 = vsub.s32 0, %v151
    %v153 = vrot.slane %v148, %v152
    %v155 = vadd.f32 %v147, %v153
    %v156 = vpack.c.bf16 %v146, %v146
    %v157 = vld [vmem:[#allocation2] sm:$0xf]
    %v158 = vld [vmem:[#allocation2 + $0x4] sm:$0xf]
    %v159 = vld [vmem:[#allocation2 + $0x8] sm:$0xf]
    %v160 = vld [vmem:[#allocation2 + $0xc] sm:$0xf]
    %v161 = vld [vmem:[#allocation2 + $0x10] sm:$0xf]
    %v162 = vld [vmem:[#allocation2 + $0x14] sm:$0xf]
    %v163 = vld [vmem:[#allocation2 + $0x18] sm:$0xf]
    %v164 = vld [vmem:[#allocation2 + $0x1c] sm:$0xf]
    %v165 = vld [vmem:[#allocation2 + $0x20] sm:$0xf]
    %v166 = vld [vmem:[#allocation2 + $0x24] sm:$0xf]
    %v167 = vld [vmem:[#allocation2 + $0x28] sm:$0xf]
    %v168 = vld [vmem:[#allocation2 + $0x2c] sm:$0xf]
    %v169 = vld [vmem:[#allocation2 + $0x30] sm:$0xf]
    %v170 = vld [vmem:[#allocation2 + $0x34] sm:$0xf]
    %v171 = vld [vmem:[#allocation2 + $0x38] sm:$0xf]
    %v172 = vld [vmem:[#allocation2 + $0x3c] sm:$0xf]
    %v173 = vld [vmem:[%s5] sm:$0xff]
    %v190 = vunpack.c.l.b16 %v157
    %v191 = vunpack.c.l.b16 %v158
    %v192 = vunpack.c.l.b16 %v159
    %v193 = vunpack.c.l.b16 %v160
    %v194 = vunpack.c.l.b16 %v161
    %v195 = vunpack.c.l.b16 %v162
    %v196 = vunpack.c.l.b16 %v163
    %v197 = vunpack.c.l.b16 %v164
    %v198 = vunpack.c.l.b16 %v165
    %v199 = vunpack.c.l.b16 %v166
    %v200 = vunpack.c.l.b16 %v167
    %v201 = vunpack.c.l.b16 %v168
    %v202 = vunpack.c.l.b16 %v169
    %v203 = vunpack.c.l.b16 %v170
    %v204 = vunpack.c.l.b16 %v171
    %v205 = vunpack.c.l.b16 %v172
    %v206 = vpack.c.b16 %v191, %v190
    %v207 = vpack.c.b16 %v193, %v192
    %v208 = vpack.c.b16 %v195, %v194
    %v209 = vpack.c.b16 %v197, %v196
    %v210 = vpack.c.b16 %v199, %v198
    %v211 = vpack.c.b16 %v201, %v200
    %v212 = vpack.c.b16 %v203, %v202
    %v213 = vpack.c.b16 %v205, %v204
    %222 = vmatprep.subr.bf16.mxu0 0
    %223 = vmatpush1.bf16.msra.mxu0 %v206
    %224 = vmatprep.subr.bf16.mxu0 0
    %225 = vmatpush1.bf16.msra.mxu0 %v207
    %226 = vmatprep.subr.bf16.mxu0 0
    %227 = vmatpush1.bf16.msra.mxu0 %v208
    %228 = vmatprep.subr.bf16.mxu0 0
    %229 = vmatpush1.bf16.msra.mxu0 %v209
    %230 = vmatprep.subr.bf16.mxu0 0
    %231 = vmatpush1.bf16.msra.mxu0 %v210
    %232 = vmatprep.subr.bf16.mxu0 0
    %233 = vmatpush1.bf16.msra.mxu0 %v211
    %234 = vmatprep.subr.bf16.mxu0 0
    %235 = vmatpush1.bf16.msra.mxu0 %v212
    %236 = vmatprep.subr.bf16.mxu0 0
    %237 = vmatpush1.bf16.msra.mxu0 %v213
    %238 = vmatprep.subr.bf16.mxu0 0
    %239 = vmatpush1.bf16.msra.mxu0 0
    %240 = vmatprep.subr.bf16.mxu0 0
    %241 = vmatpush1.bf16.msra.mxu0 0
    %242 = vmatprep.subr.bf16.mxu0 0
    %243 = vmatpush1.bf16.msra.mxu0 0
    %244 = vmatprep.subr.bf16.mxu0 0
    %245 = vmatpush1.bf16.msra.mxu0 0
    %246 = vmatprep.subr.bf16.mxu0 0
    %247 = vmatpush1.bf16.msra.mxu0 0
    %248 = vmatprep.subr.bf16.mxu0 0
    %249 = vmatpush1.bf16.msra.mxu0 0
    %250 = vmatprep.subr.bf16.mxu0 0
    %251 = vmatpush1.bf16.msra.mxu0 0
    %252 = vmatprep.subr.bf16.mxu0 0
    %253 = vmatpush1.bf16.msra.mxu0 0
    %254 = vmatprep.mubr.bf16.mxu0 0
    %255 = vmatmul.mubr.bf16.gmra.mrb[0].mxu0 %v156
    %v256 = vpop.f32.mrb[0].mxu0
    %v257 = vadd.f32 %v173, %v256
    %v258 = vpop.f32.mrb[0].mxu0
    %v259 = vpop.f32.mrb[0].mxu0
    %v260 = vpop.f32.mrb[0].mxu0
    %261 = vdwg.mxu0
    %v262 = vld [vmem:[%s6] sm:$0x1]
    %v263 = vld [vmem:[%s7] sm:$0x1]
    %264 = vadd.xlane.f32.xlu0 %v257
    %v265 = vpop.xlane.xlu0 %264
    %v266 = vrcp.pop 128.0
    %v267 = vmul.f32 %v265, %v266
    %v268 = vmul.f32 %v257, %v257
    %269 = vadd.xlane.f32.xlu0 %v268
    %v270 = vpop.xlane.xlu0 %269
    %v271 = vmul.f32 %v270, %v266
    %v272 = vmul.f32 %v267, %v267
    %v273 = vsub.f32 %v271, %v272
    %v274 = vsub.f32 %v257, %v267
    %v275 = vadd.f32 %v273, 1e-05
    %v276 = vrsqrt.pop %v275
    %v277 = vmul.f32 %v274, %v276
    %v279 = vlaneseq
    %v280 = vshrl.u32 %v279, 7
    %v281 = vsub.s32 0, %v280
    %v282 = vrot.slane %v262, %v281
    %v284 = vmul.f32 %v277, %v282
    %v286 = vlaneseq
    %v287 = vshrl.u32 %v286, 7
    %v288 = vsub.s32 0, %v287
    %v289 = vrot.slane %v263, %v288
    %v291 = vadd.f32 %v284, %v289
    %v292 = vpack.c.bf16 %v291, %v291
    %v293 = vld [vmem:[#allocation5] sm:$0xff]
    %v294 = vld [vmem:[#allocation5 + $0x8] sm:$0xff]
    %v295 = vld [vmem:[#allocation5 + $0x10] sm:$0xff]
    %v296 = vld [vmem:[#allocation5 + $0x18] sm:$0xff]
    %v297 = vld [vmem:[#allocation5 + $0x20] sm:$0xff]
    %v298 = vld [vmem:[#allocation5 + $0x28] sm:$0xff]
    %v299 = vld [vmem:[#allocation5 + $0x30] sm:$0xff]
    %v300 = vld [vmem:[#allocation5 + $0x38] sm:$0xff]
    %v301 = vld [vmem:[#allocation5 + $0x40] sm:$0xff]
    %v302 = vld [vmem:[#allocation5 + $0x48] sm:$0xff]
    %v303 = vld [vmem:[#allocation5 + $0x50] sm:$0xff]
    %v304 = vld [vmem:[#allocation5 + $0x58] sm:$0xff]
    %v305 = vld [vmem:[#allocation5 + $0x60] sm:$0xff]
    %v306 = vld [vmem:[#allocation5 + $0x68] sm:$0xff]
    %v307 = vld [vmem:[#allocation5 + $0x70] sm:$0xff]
    %v308 = vld [vmem:[#allocation5 + $0x78] sm:$0xff]
    %v309 = vld [vmem:[#allocation5 + $0x80] sm:$0xff]
    %v310 = vld [vmem:[#allocation5 + $0x88] sm:$0xff]
    %v311 = vld [vmem:[#allocation5 + $0x90] sm:$0xff]
    %v312 = vld [vmem:[#allocation5 + $0x98] sm:$0xff]
    %v313 = vld [vmem:[#allocation5 + $0xa0] sm:$0xff]
    %v314 = vld [vmem:[#allocation5 + $0xa8] sm:$0xff]
    %v315 = vld [vmem:[#allocation5 + $0xb0] sm:$0xff]
    %v316 = vld [vmem:[#allocation5 + $0xb8] sm:$0xff]
    %v317 = vld [vmem:[#allocation5 + $0xc0] sm:$0xff]
    %v318 = vld [vmem:[#allocation5 + $0xc8] sm:$0xff]
    %v319 = vld [vmem:[#allocation5 + $0xd0] sm:$0xff]
    %v320 = vld [vmem:[#allocation5 + $0xd8] sm:$0xff]
    %v321 = vld [vmem:[#allocation5 + $0xe0] sm:$0xff]
    %v322 = vld [vmem:[#allocation5 + $0xe8] sm:$0xff]
    %v323 = vld [vmem:[#allocation5 + $0xf0] sm:$0xff]
    %v324 = vld [vmem:[#allocation5 + $0xf8] sm:$0xff]
    %v325 = vld [vmem:[%s11] sm:$0xf]
    %v327 = vlaneseq
    %v328 = vshrl.u32 %v327, 7
    %v329 = vsub.s32 0, %v328
    %v330 = vrot.slane %v325, %v329
    %v331 = vlaneseq
    %v332 = vshrl.u32 %v331, 7
    %v333 = vsub.s32 1, %v332
    %v334 = vrot.slane %v325, %v333
    %v335 = vlaneseq
    %v336 = vshrl.u32 %v335, 7
    %v337 = vsub.s32 2, %v336
    %v338 = vrot.slane %v325, %v337
    %v339 = vlaneseq
    %v340 = vshrl.u32 %v339, 7
    %v341 = vsub.s32 3, %v340
    %v342 = vrot.slane %v325, %v341
    %v379 = vunpack.c.l.b16 %v293
    %v380 = vunpack.c.h.b16 %v293
    %v381 = vunpack.c.l.b16 %v294
    %v382 = vunpack.c.h.b16 %v294
    %v383 = vunpack.c.l.b16 %v295
    %v384 = vunpack.c.h.b16 %v295
    %v385 = vunpack.c.l.b16 %v296
    %v386 = vunpack.c.h.b16 %v296
    %v387 = vunpack.c.l.b16 %v297
    %v388 = vunpack.c.h.b16 %v297
    %v389 = vunpack.c.l.b16 %v298
    %v390 = vunpack.c.h.b16 %v298
    %v391 = vunpack.c.l.b16 %v299
    %v392 = vunpack.c.h.b16 %v299
    %v393 = vunpack.c.l.b16 %v300
    %v394 = vunpack.c.h.b16 %v300
    %v395 = vunpack.c.l.b16 %v301
    %v396 = vunpack.c.h.b16 %v301
    %v397 = vunpack.c.l.b16 %v302
    %v398 = vunpack.c.h.b16 %v302
    %v399 = vunpack.c.l.b16 %v303
    %v400 = vunpack.c.h.b16 %v303
    %v401 = vunpack.c.l.b16 %v304
    %v402 = vunpack.c.h.b16 %v304
    %v403 = vunpack.c.l.b16 %v305
    %v404 = vunpack.c.h.b16 %v305
    %v405 = vunpack.c.l.b16 %v306
    %v406 = vunpack.c.h.b16 %v306
    %v407 = vunpack.c.l.b16 %v307
    %v408 = vunpack.c.h.b16 %v307
    %v409 = vunpack.c.l.b16 %v308
    %v410 = vunpack.c.h.b16 %v308
    %v411 = vunpack.c.l.b16 %v309
    %v412 = vunpack.c.h.b16 %v309
    %v413 = vunpack.c.l.b16 %v310
    %v414 = vunpack.c.h.b16 %v310
    %v415 = vunpack.c.l.b16 %v311
    %v416 = vunpack.c.h.b16 %v311
    %v417 = vunpack.c.l.b16 %v312
    %v418 = vunpack.c.h.b16 %v312
    %v419 = vunpack.c.l.b16 %v313
    %v420 = vunpack.c.h.b16 %v313
    %v421 = vunpack.c.l.b16 %v314
    %v422 = vunpack.c.h.b16 %v314
    %v423 = vunpack.c.l.b16 %v315
    %v424 = vunpack.c.h.b16 %v315
    %v425 = vunpack.c.l.b16 %v316
    %v426 = vunpack.c.h.b16 %v316
    %v427 = vunpack.c.l.b16 %v317
    %v428 = vunpack.c.h.b16 %v317
    %v429 = vunpack.c.l.b16 %v318
    %v430 = vunpack.c.h.b16 %v318
    %v431 = vunpack.c.l.b16 %v319
    %v432 = vunpack.c.h.b16 %v319
    %v433 = vunpack.c.l.b16 %v320
    %v434 = vunpack.c.h.b16 %v320
    %v435 = vunpack.c.l.b16 %v321
    %v436 = vunpack.c.h.b16 %v321
    %v437 = vunpack.c.l.b16 %v322
    %v438 = vunpack.c.h.b16 %v322
    %v439 = vunpack.c.l.b16 %v323
    %v440 = vunpack.c.h.b16 %v323
    %v441 = vunpack.c.l.b16 %v324
    %v442 = vunpack.c.h.b16 %v324
    %v443 = vpack.c.b16 %v383, %v379
    %v444 = vpack.c.b16 %v384, %v380
    %v445 = vpack.c.b16 %v385, %v381
    %v446 = vpack.c.b16 %v386, %v382
    %v447 = vpack.c.b16 %v391, %v387
    %v448 = vpack.c.b16 %v392, %v388
    %v449 = vpack.c.b16 %v393, %v389
    %v450 = vpack.c.b16 %v394, %v390
    %v451 = vpack.c.b16 %v399, %v395
    %v452 = vpack.c.b16 %v400, %v396
    %v453 = vpack.c.b16 %v401, %v397
    %v454 = vpack.c.b16 %v402, %v398
    %v455 = vpack.c.b16 %v407, %v403
    %v456 = vpack.c.b16 %v408, %v404
    %v457 = vpack.c.b16 %v409, %v405
    %v458 = vpack.c.b16 %v410, %v406
    %v459 = vpack.c.b16 %v415, %v411
    %v460 = vpack.c.b16 %v416, %v412
    %v461 = vpack.c.b16 %v417, %v413
    %v462 = vpack.c.b16 %v418, %v414
    %v463 = vpack.c.b16 %v423, %v419
    %v464 = vpack.c.b16 %v424, %v420
    %v465 = vpack.c.b16 %v425, %v421
    %v466 = vpack.c.b16 %v426, %v422
    %v467 = vpack.c.b16 %v431, %v427
    %v468 = vpack.c.b16 %v432, %v428
    %v469 = vpack.c.b16 %v433, %v429
    %v470 = vpack.c.b16 %v434, %v430
    %v471 = vpack.c.b16 %v439, %v435
    %v472 = vpack.c.b16 %v440, %v436
    %v473 = vpack.c.b16 %v441, %v437
    %v474 = vpack.c.b16 %v442, %v438
    %507 = vmatprep.subr.bf16.mxu0 %v444
    %508 = vmatpush1.bf16.msra.mxu0 %v443
    %509 = vmatprep.subr.bf16.mxu0 %v448
    %510 = vmatpush1.bf16.msra.mxu0 %v447
    %511 = vmatprep.subr.bf16.mxu0 %v452
    %512 = vmatpush1.bf16.msra.mxu0 %v451
    %513 = vmatprep.subr.bf16.mxu0 %v456
    %514 = vmatpush1.bf16.msra.mxu0 %v455
    %515 = vmatprep.subr.bf16.mxu0 %v460
    %516 = vmatpush1.bf16.msra.mxu0 %v459
    %517 = vmatprep.subr.bf16.mxu0 %v464
    %518 = vmatpush1.bf16.msra.mxu0 %v463
    %519 = vmatprep.subr.bf16.mxu0 %v468
    %520 = vmatpush1.bf16.msra.mxu0 %v467
    %521 = vmatprep.subr.bf16.mxu0 %v472
    %522 = vmatpush1.bf16.msra.mxu0 %v471
    %523 = vmatprep.subr.bf16.mxu0 0
    %524 = vmatpush1.bf16.msra.mxu0 0
    %525 = vmatprep.subr.bf16.mxu0 0
    %526 = vmatpush1.bf16.msra.mxu0 0
    %527 = vmatprep.subr.bf16.mxu0 0
    %528 = vmatpush1.bf16.msra.mxu0 0
    %529 = vmatprep.subr.bf16.mxu0 0
    %530 = vmatpush1.bf16.msra.mxu0 0
    %531 = vmatprep.subr.bf16.mxu0 0
    %532 = vmatpush1.bf16.msra.mxu0 0
    %533 = vmatprep.subr.bf16.mxu0 0
    %534 = vmatpush1.bf16.msra.mxu0 0
    %535 = vmatprep.subr.bf16.mxu0 0
    %536 = vmatpush1.bf16.msra.mxu0 0
    %537 = vmatprep.subr.bf16.mxu0 0
    %538 = vmatpush1.bf16.msra.mxu0 0
    %539 = vmatprep.mubr.bf16.mxu0 0
    %540 = vmatmul.mubr.bf16.gmra.mrb[0].mxu0 %v292
    %v541 = vpop.f32.mrb[0].mxu0
    %v542 = vadd.f32 %v330, %v541
    %v543 = vpop.f32.mrb[0].mxu0
    %v544 = vadd.f32 %v334, %v543
    %v545 = vpop.f32.mrb[0].mxu0
    %v546 = vpop.f32.mrb[0].mxu0
    %547 = vdwg.mxu0
    %548 = vmatprep.subr.bf16.mxu0 %v446
    %549 = vmatpush1.bf16.msra.mxu0 %v445
    %550 = vmatprep.subr.bf16.mxu0 %v450
    %551 = vmatpush1.bf16.msra.mxu0 %v449
    %552 = vmatprep.subr.bf16.mxu0 %v454
    %553 = vmatpush1.bf16.msra.mxu0 %v453
    %554 = vmatprep.subr.bf16.mxu0 %v458
    %555 = vmatpush1.bf16.msra.mxu0 %v457
    %556 = vmatprep.subr.bf16.mxu0 %v462
    %557 = vmatpush1.bf16.msra.mxu0 %v461
    %558 = vmatprep.subr.bf16.mxu0 %v466
    %559 = vmatpush1.bf16.msra.mxu0 %v465
    %560 = vmatprep.subr.bf16.mxu0 %v470
    %561 = vmatpush1.bf16.msra.mxu0 %v469
    %562 = vmatprep.subr.bf16.mxu0 %v474
    %563 = vmatpush1.bf16.msra.mxu0 %v473
    %564 = vmatprep.subr.bf16.mxu0 0
    %565 = vmatpush1.bf16.msra.mxu0 0
    %566 = vmatprep.subr.bf16.mxu0 0
    %567 = vmatpush1.bf16.msra.mxu0 0
    %568 = vmatprep.subr.bf16.mxu0 0
    %569 = vmatpush1.bf16.msra.mxu0 0
    %570 = vmatprep.subr.bf16.mxu0 0
    %571 = vmatpush1.bf16.msra.mxu0 0
    %572 = vmatprep.subr.bf16.mxu0 0
    %573 = vmatpush1.bf16.msra.mxu0 0
    %574 = vmatprep.subr.bf16.mxu0 0
    %575 = vmatpush1.bf16.msra.mxu0 0
    %576 = vmatprep.subr.bf16.mxu0 0
    %577 = vmatpush1.bf16.msra.mxu0 0
    %578 = vmatprep.subr.bf16.mxu0 0
    %579 = vmatpush1.bf16.msra.mxu0 0
    %580 = vmatprep.mubr.bf16.mxu0 0
    %581 = vmatmul.mubr.bf16.gmra.mrb[0].mxu0 %v292
    %v582 = vpop.f32.mrb[0].mxu0
    %v583 = vadd.f32 %v338, %v582
    %v584 = vpop.f32.mrb[0].mxu0
    %v585 = vadd.f32 %v342, %v584
    %v586 = vpop.f32.mrb[0].mxu0
    %v587 = vpop.f32.mrb[0].mxu0
    %588 = vdwg.mxu0
    %vm589 = vcmask 523264
    %v591 = vsel %vm589, %v542, 0
    %v594 = vsel %vm589, %v544, 0
    %596 = vmatprep.subr.mxu0 0.0
    %597 = vmatpush1.xpose.msra.mxu0 %v594
    %598 = vmatprep.subr.mxu0 0.0
    %599 = vmatpush1.xpose.msra.mxu0 0.0
    %600 = vmatprep.subr.mxu0 0.0
    %601 = vmatpush1.xpose.msra.mxu0 0.0
    %602 = vmatprep.subr.mxu0 0.0
    %603 = vmatpush1.xpose.msra.mxu0 0.0
    %604 = vmatprep.subr.mxu0 0.0
    %605 = vmatpush1.xpose.msra.mxu0 0.0
    %606 = vmatprep.subr.mxu0 0.0
    %607 = vmatpush1.xpose.msra.mxu0 0.0
    %608 = vmatprep.subr.mxu0 0.0
    %609 = vmatpush1.xpose.msra.mxu0 0.0
    %610 = vmatprep.subr.mxu0 0.0
    %611 = vmatpush1.xpose.msra.mxu0 0.0
    %612 = vmatprep.subr.mxu0 0.0
    %613 = vmatpush1.xpose.msra.mxu0 0.0
    %614 = vmatprep.subr.mxu0 0.0
    %615 = vmatpush1.xpose.msra.mxu0 0.0
    %616 = vmatprep.subr.mxu0 0.0
    %617 = vmatpush1.xpose.msra.mxu0 0.0
    %618 = vmatprep.subr.mxu0 0.0
    %619 = vmatpush1.xpose.msra.mxu0 0.0
    %620 = vmatprep.subr.mxu0 0.0
    %621 = vmatpush1.xpose.msra.mxu0 0.0
    %622 = vmatprep.subr.mxu0 0.0
    %623 = vmatpush1.xpose.msra.mxu0 0.0
    %624 = vmatprep.subr.mxu0 0.0
    %625 = vmatpush1.xpose.msra.mxu0 0.0
    %626 = vmatprep.subr.mxu0 0.0
    %627 = vmatpush1.xpose.msra.mxu0 0.0
    %628 = vmatprep.subr.mxu0 0.0
    %629 = vmatpush1.xpose.msra.mxu0 0.0
    %630 = vmatprep.subr.mxu0 0.0
    %631 = vmatpush1.xpose.msra.mxu0 0.0
    %632 = vmatprep.subr.mxu0 0.0
    %633 = vmatpush1.xpose.msra.mxu0 0.0
    %634 = vmatprep.subr.mxu0 0.0
    %635 = vmatpush1.xpose.msra.mxu0 0.0
    %636 = vmatprep.subr.mxu0 0.0
    %637 = vmatpush1.xpose.msra.mxu0 0.0
    %638 = vmatprep.subr.mxu0 0.0
    %639 = vmatpush1.xpose.msra.mxu0 0.0
    %640 = vmatprep.subr.mxu0 0.0
    %641 = vmatpush1.xpose.msra.mxu0 0.0
    %642 = vmatprep.subr.mxu0 0.0
    %643 = vmatpush1.xpose.msra.mxu0 0.0
    %644 = vmatprep.subr.mxu0 0.0
    %645 = vmatpush1.xpose.msra.mxu0 0.0
    %646 = vmatprep.subr.mxu0 0.0
    %647 = vmatpush1.xpose.msra.mxu0 0.0
    %648 = vmatprep.subr.mxu0 0.0
    %649 = vmatpush1.xpose.msra.mxu0 0.0
    %650 = vmatprep.subr.mxu0 0.0
    %651 = vmatpush1.xpose.msra.mxu0 0.0
    %652 = vmatprep.subr.mxu0 0.0
    %653 = vmatpush1.xpose.msra.mxu0 0.0
    %654 = vmatprep.subr.mxu0 0.0
    %655 = vmatpush1.xpose.msra.mxu0 0.0
    %656 = vmatprep.subr.mxu0 0.0
    %657 = vmatpush1.xpose.msra.mxu0 0.0
    %658 = vmatprep.subr.mxu0 0.0
    %659 = vmatpush1.xpose.msra.mxu0 0.0
    %660 = vmatprep.mubr.f32.mxu0 0.0
    %661 = vmatmul.mubr.f32.gmra.mrb[0].mxu0 %v591
    %v662 = vpop.f32.mrb[0].mxu0
    %v663 = vadd.f32 %v155, %v662
    %v664 = vpop.f32.mrb[0].mxu0
    %665 = vdwg.mxu0
    %v666 = vmul.f32 %v663, 1.442695
    %v667 = vpow.pop %v666
    %vm668 = vcmask 64512
    %v669 = vsel %vm668, %v667, 0.0
    %670 = vadd.xlane.f32.xlu0 %v669
    %v671 = vpop.xlane.xlu0 %670
    %v672 = vrcp.pop %v671
    %v673 = vmul.f32 %v667, %v672
    %674 = vrot.lane.b32.xlu0 %v542, 64
    %v675 = vpop.permute.xlu0 %674
    %676 = vrot.lane.b32.xlu0 %v544, 64
    %v677 = vpop.permute.xlu0 %676
    %v678 = vsel %vm589, %v675, 0
    %v680 = vsel %vm589, %v677, 0
    %682 = vmatprep.subr.mxu0 0.0
    %683 = vmatpush1.xpose.msra.mxu0 %v680
    %684 = vmatprep.subr.mxu0 0.0
    %685 = vmatpush1.xpose.msra.mxu0 0.0
    %686 = vmatprep.subr.mxu0 0.0
    %687 = vmatpush1.xpose.msra.mxu0 0.0
    %688 = vmatprep.subr.mxu0 0.0
    %689 = vmatpush1.xpose.msra.mxu0 0.0
    %690 = vmatprep.subr.mxu0 0.0
    %691 = vmatpush1.xpose.msra.mxu0 0.0
    %692 = vmatprep.subr.mxu0 0.0
    %693 = vmatpush1.xpose.msra.mxu0 0.0
    %694 = vmatprep.subr.mxu0 0.0
    %695 = vmatpush1.xpose.msra.mxu0 0.0
    %696 = vmatprep.subr.mxu0 0.0
    %697 = vmatpush1.xpose.msra.mxu0 0.0
    %698 = vmatprep.subr.mxu0 0.0
    %699 = vmatpush1.xpose.msra.mxu0 0.0
    %700 = vmatprep.subr.mxu0 0.0
    %701 = vmatpush1.xpose.msra.mxu0 0.0
    %702 = vmatprep.subr.mxu0 0.0
    %703 = vmatpush1.xpose.msra.mxu0 0.0
    %704 = vmatprep.subr.mxu0 0.0
    %705 = vmatpush1.xpose.msra.mxu0 0.0
    %706 = vmatprep.subr.mxu0 0.0
    %707 = vmatpush1.xpose.msra.mxu0 0.0
    %708 = vmatprep.subr.mxu0 0.0
    %709 = vmatpush1.xpose.msra.mxu0 0.0
    %710 = vmatprep.subr.mxu0 0.0
    %711 = vmatpush1.xpose.msra.mxu0 0.0
    %712 = vmatprep.subr.mxu0 0.0
    %713 = vmatpush1.xpose.msra.mxu0 0.0
    %714 = vmatprep.subr.mxu0 0.0
    %715 = vmatpush1.xpose.msra.mxu0 0.0
    %716 = vmatprep.subr.mxu0 0.0
    %717 = vmatpush1.xpose.msra.mxu0 0.0
    %718 = vmatprep.subr.mxu0 0.0
    %719 = vmatpush1.xpose.msra.mxu0 0.0
    %720 = vmatprep.subr.mxu0 0.0
    %721 = vmatpush1.xpose.msra.mxu0 0.0
    %722 = vmatprep.subr.mxu0 0.0
    %723 = vmatpush1.xpose.msra.mxu0 0.0
    %724 = vmatprep.subr.mxu0 0.0
    %725 = vmatpush1.xpose.msra.mxu0 0.0
    %726 = vmatprep.subr.mxu0 0.0
    %727 = vmatpush1.xpose.msra.mxu0 0.0
    %728 = vmatprep.subr.mxu0 0.0
    %729 = vmatpush1.xpose.msra.mxu0 0.0
    %730 = vmatprep.subr.mxu0 0.0
    %731 = vmatpush1.xpose.msra.mxu0 0.0
    %732 = vmatprep.subr.mxu0 0.0
    %733 = vmatpush1.xpose.msra.mxu0 0.0
    %734 = vmatprep.subr.mxu0 0.0
    %735 = vmatpush1.xpose.msra.mxu0 0.0
    %736 = vmatprep.subr.mxu0 0.0
    %737 = vmatpush1.xpose.msra.mxu0 0.0
    %738 = vmatprep.subr.mxu0 0.0
    %739 = vmatpush1.xpose.msra.mxu0 0.0
    %740 = vmatprep.subr.mxu0 0.0
    %741 = vmatpush1.xpose.msra.mxu0 0.0
    %742 = vmatprep.subr.mxu0 0.0
    %743 = vmatpush1.xpose.msra.mxu0 0.0
    %744 = vmatprep.subr.mxu0 0.0
    %745 = vmatpush1.xpose.msra.mxu0 0.0
    %746 = vmatprep.mubr.f32.mxu0 0.0
    %747 = vmatmul.mubr.f32.gmra.mrb[0].mxu0 %v678
    %v748 = vpop.f32.mrb[0].mxu0
    %v749 = vadd.f32 %v155, %v748
    %v750 = vpop.f32.mrb[0].mxu0
    %751 = vdwg.mxu0
    %v752 = vmul.f32 %v749, 1.442695
    %v753 = vpow.pop %v752
    %v754 = vsel %vm668, %v753, 0.0
    %755 = vadd.xlane.f32.xlu0 %v754
    %v756 = vpop.xlane.xlu0 %755
    %v757 = vrcp.pop %v756
    %v758 = vmul.f32 %v753, %v757
    %v760 = vsel %vm668, %v758, 0
    %762 = vmatprep.subr.mxu0 0.0
    %763 = vmatpush1.msra.mxu0 %v585
    %764 = vmatprep.subr.mxu0 0.0
    %765 = vmatpush1.msra.mxu0 0.0
    %766 = vmatprep.subr.mxu0 0.0
    %767 = vmatpush1.msra.mxu0 0.0
    %768 = vmatprep.subr.mxu0 0.0
    %769 = vmatpush1.msra.mxu0 0.0
    %770 = vmatprep.subr.mxu0 0.0
    %771 = vmatpush1.msra.mxu0 0.0
    %772 = vmatprep.subr.mxu0 0.0
    %773 = vmatpush1.msra.mxu0 0.0
    %774 = vmatprep.subr.mxu0 0.0
    %775 = vmatpush1.msra.mxu0 0.0
    %776 = vmatprep.subr.mxu0 0.0
    %777 = vmatpush1.msra.mxu0 0.0
    %778 = vmatprep.subr.mxu0 0.0
    %779 = vmatpush1.msra.mxu0 0.0
    %780 = vmatprep.subr.mxu0 0.0
    %781 = vmatpush1.msra.mxu0 0.0
    %782 = vmatprep.subr.mxu0 0.0
    %783 = vmatpush1.msra.mxu0 0.0
    %784 = vmatprep.subr.mxu0 0.0
    %785 = vmatpush1.msra.mxu0 0.0
    %786 = vmatprep.subr.mxu0 0.0
    %787 = vmatpush1.msra.mxu0 0.0
    %788 = vmatprep.subr.mxu0 0.0
    %789 = vmatpush1.msra.mxu0 0.0
    %790 = vmatprep.subr.mxu0 0.0
    %791 = vmatpush1.msra.mxu0 0.0
    %792 = vmatprep.subr.mxu0 0.0
    %793 = vmatpush1.msra.mxu0 0.0
    %794 = vmatprep.subr.mxu0 0.0
    %795 = vmatpush1.msra.mxu0 0.0
    %796 = vmatprep.subr.mxu0 0.0
    %797 = vmatpush1.msra.mxu0 0.0
    %798 = vmatprep.subr.mxu0 0.0
    %799 = vmatpush1.msra.mxu0 0.0
    %800 = vmatprep.subr.mxu0 0.0
    %801 = vmatpush1.msra.mxu0 0.0
    %802 = vmatprep.subr.mxu0 0.0
    %803 = vmatpush1.msra.mxu0 0.0
    %804 = vmatprep.subr.mxu0 0.0
    %805 = vmatpush1.msra.mxu0 0.0
    %806 = vmatprep.subr.mxu0 0.0
    %807 = vmatpush1.msra.mxu0 0.0
    %808 = vmatprep.subr.mxu0 0.0
    %809 = vmatpush1.msra.mxu0 0.0
    %810 = vmatprep.subr.mxu0 0.0
    %811 = vmatpush1.msra.mxu0 0.0
    %812 = vmatprep.subr.mxu0 0.0
    %813 = vmatpush1.msra.mxu0 0.0
    %814 = vmatprep.subr.mxu0 0.0
    %815 = vmatpush1.msra.mxu0 0.0
    %816 = vmatprep.subr.mxu0 0.0
    %817 = vmatpush1.msra.mxu0 0.0
    %818 = vmatprep.subr.mxu0 0.0
    %819 = vmatpush1.msra.mxu0 0.0
    %820 = vmatprep.subr.mxu0 0.0
    %821 = vmatpush1.msra.mxu0 0.0
    %822 = vmatprep.subr.mxu0 0.0
    %823 = vmatpush1.msra.mxu0 0.0
    %824 = vmatprep.subr.mxu0 0.0
    %825 = vmatpush1.msra.mxu0 0.0
    %826 = vmatprep.mubr.f32.mxu0 0.0
    %827 = vmatmul.mubr.f32.gmra.mrb[0].mxu0 %v760
    %v828 = vpop.f32.mrb[0].mxu0
    %v829 = vadd.f32 0.0, %v828
    %v830 = vpop.f32.mrb[0].mxu0
    %831 = vdwg.mxu0
    %v833 = vsel %vm668, %v673, 0
    %835 = vmatprep.subr.mxu0 0.0
    %836 = vmatpush1.msra.mxu0 %v583
    %837 = vmatprep.subr.mxu0 0.0
    %838 = vmatpush1.msra.mxu0 0.0
    %839 = vmatprep.subr.mxu0 0.0
    %840 = vmatpush1.msra.mxu0 0.0
    %841 = vmatprep.subr.mxu0 0.0
    %842 = vmatpush1.msra.mxu0 0.0
    %843 = vmatprep.subr.mxu0 0.0
    %844 = vmatpush1.msra.mxu0 0.0
    %845 = vmatprep.subr.mxu0 0.0
    %846 = vmatpush1.msra.mxu0 0.0
    %847 = vmatprep.subr.mxu0 0.0
    %848 = vmatpush1.msra.mxu0 0.0
    %849 = vmatprep.subr.mxu0 0.0
    %850 = vmatpush1.msra.mxu0 0.0
    %851 = vmatprep.subr.mxu0 0.0
    %852 = vmatpush1.msra.mxu0 0.0
    %853 = vmatprep.subr.mxu0 0.0
    %854 = vmatpush1.msra.mxu0 0.0
    %855 = vmatprep.subr.mxu0 0.0
    %856 = vmatpush1.msra.mxu0 0.0
    %857 = vmatprep.subr.mxu0 0.0
    %858 = vmatpush1.msra.mxu0 0.0
    %859 = vmatprep.subr.mxu0 0.0
    %860 = vmatpush1.msra.mxu0 0.0
    %861 = vmatprep.subr.mxu0 0.0
    %862 = vmatpush1.msra.mxu0 0.0
    %863 = vmatprep.subr.mxu0 0.0
    %864 = vmatpush1.msra.mxu0 0.0
    %865 = vmatprep.subr.mxu0 0.0
    %866 = vmatpush1.msra.mxu0 0.0
    %867 = vmatprep.subr.mxu0 0.0
    %868 = vmatpush1.msra.mxu0 0.0
    %869 = vmatprep.subr.mxu0 0.0
    %870 = vmatpush1.msra.mxu0 0.0
    %871 = vmatprep.subr.mxu0 0.0
    %872 = vmatpush1.msra.mxu0 0.0
    %873 = vmatprep.subr.mxu0 0.0
    %874 = vmatpush1.msra.mxu0 0.0
    %875 = vmatprep.subr.mxu0 0.0
    %876 = vmatpush1.msra.mxu0 0.0
    %877 = vmatprep.subr.mxu0 0.0
    %878 = vmatpush1.msra.mxu0 0.0
    %879 = vmatprep.subr.mxu0 0.0
    %880 = vmatpush1.msra.mxu0 0.0
    %881 = vmatprep.subr.mxu0 0.0
    %882 = vmatpush1.msra.mxu0 0.0
    %883 = vmatprep.subr.mxu0 0.0
    %884 = vmatpush1.msra.mxu0 0.0
    %885 = vmatprep.subr.mxu0 0.0
    %886 = vmatpush1.msra.mxu0 0.0
    %887 = vmatprep.subr.mxu0 0.0
    %888 = vmatpush1.msra.mxu0 0.0
    %889 = vmatprep.subr.mxu0 0.0
    %890 = vmatpush1.msra.mxu0 0.0
    %891 = vmatprep.subr.mxu0 0.0
    %892 = vmatpush1.msra.mxu0 0.0
    %893 = vmatprep.subr.mxu0 0.0
    %894 = vmatpush1.msra.mxu0 0.0
    %895 = vmatprep.subr.mxu0 0.0
    %896 = vmatpush1.msra.mxu0 0.0
    %897 = vmatprep.subr.mxu0 0.0
    %898 = vmatpush1.msra.mxu0 0.0
    %899 = vmatprep.mubr.f32.mxu0 0.0
    %900 = vmatmul.mubr.f32.gmra.mrb[0].mxu0 %v833
    %v901 = vpop.f32.mrb[0].mxu0
    %v902 = vadd.f32 %v829, %v901
    %v903 = vpop.f32.mrb[0].mxu0
    %904 = vdwg.mxu0
    %v905 = vadd.f32 %v257, %v902
    %v906 = vld [vmem:[%s12] sm:$0x1]
    %v908 = vlaneseq
    %v909 = vshrl.u32 %v908, 7
    %v910 = vsub.s32 0, %v909
    %v911 = vrot.slane %v906, %v910
    %v913 = vadd.f32 %v905, %v911
    %v914 = vld [vmem:[%s8] sm:$0x1]
    %v915 = vld [vmem:[%s9] sm:$0x1]
    %916 = vadd.xlane.f32.xlu0 %v913
    %v917 = vpop.xlane.xlu0 %916
    %v918 = vmul.f32 %v917, %v266
    %v919 = vmul.f32 %v913, %v913
    %920 = vadd.xlane.f32.xlu0 %v919
    %v921 = vpop.xlane.xlu0 %920
    %v922 = vmul.f32 %v921, %v266
    %v923 = vmul.f32 %v918, %v918
    %v924 = vsub.f32 %v922, %v923
    %v925 = vsub.f32 %v913, %v918
    %v926 = vadd.f32 %v924, 1e-05
    %v927 = vrsqrt.pop %v926
    %v928 = vmul.f32 %v925, %v927
    %v930 = vlaneseq
    %v931 = vshrl.u32 %v930, 7
    %v932 = vsub.s32 0, %v931
    %v933 = vrot.slane %v914, %v932
    %v935 = vmul.f32 %v928, %v933
    %v937 = vlaneseq
    %v938 = vshrl.u32 %v937, 7
    %v939 = vsub.s32 0, %v938
    %v940 = vrot.slane %v915, %v939
    %v942 = vadd.f32 %v935, %v940
    %v943 = vpack.c.bf16 %v942, %v942
    %v944 = vld [vmem:[#allocation7] sm:$0xf]
    %v945 = vld [vmem:[#allocation7 + $0x4] sm:$0xf]
    %v946 = vld [vmem:[#allocation7 + $0x8] sm:$0xf]
    %v947 = vld [vmem:[#allocation7 + $0xc] sm:$0xf]
    %v948 = vld [vmem:[#allocation7 + $0x10] sm:$0xf]
    %v949 = vld [vmem:[#allocation7 + $0x14] sm:$0xf]
    %v950 = vld [vmem:[#allocation7 + $0x18] sm:$0xf]
    %v951 = vld [vmem:[#allocation7 + $0x1c] sm:$0xf]
    %v952 = vld [vmem:[#allocation7 + $0x20] sm:$0xf]
    %v953 = vld [vmem:[#allocation7 + $0x24] sm:$0xf]
    %v954 = vld [vmem:[#allocation7 + $0x28] sm:$0xf]
    %v955 = vld [vmem:[#allocation7 + $0x2c] sm:$0xf]
    %v956 = vld [vmem:[#allocation7 + $0x30] sm:$0xf]
    %v957 = vld [vmem:[#allocation7 + $0x34] sm:$0xf]
    %v958 = vld [vmem:[#allocation7 + $0x38] sm:$0xf]
    %v959 = vld [vmem:[#allocation7 + $0x3c] sm:$0xf]
    %v960 = vld [vmem:[#allocation8] sm:$0x1]
    %v962 = vlaneseq
    %v963 = vshrl.u32 %v962, 7
    %v964 = vsub.s32 0, %v963
    %v965 = vrot.slane %v960, %v964
    %v983 = vunpack.c.l.b16 %v944
    %v984 = vunpack.c.l.b16 %v945
    %v985 = vunpack.c.l.b16 %v946
    %v986 = vunpack.c.l.b16 %v947
    %v987 = vunpack.c.l.b16 %v948
    %v988 = vunpack.c.l.b16 %v949
    %v989 = vunpack.c.l.b16 %v950
    %v990 = vunpack.c.l.b16 %v951
    %v991 = vunpack.c.l.b16 %v952
    %v992 = vunpack.c.l.b16 %v953
    %v993 = vunpack.c.l.b16 %v954
    %v994 = vunpack.c.l.b16 %v955
    %v995 = vunpack.c.l.b16 %v956
    %v996 = vunpack.c.l.b16 %v957
    %v997 = vunpack.c.l.b16 %v958
    %v998 = vunpack.c.l.b16 %v959
    %v999 = vpack.c.b16 %v984, %v983
    %v1000 = vpack.c.b16 %v986, %v985
    %v1001 = vpack.c.b16 %v988, %v987
    %v1002 = vpack.c.b16 %v990, %v989
    %v1003 = vpack.c.b16 %v992, %v991
    %v1004 = vpack.c.b16 %v994, %v993
    %v1005 = vpack.c.b16 %v996, %v995
    %v1006 = vpack.c.b16 %v998, %v997
    %1015 = vmatprep.subr.bf16.mxu0 0
    %1016 = vmatpush1.bf16.msra.mxu0 %v999
    %1017 = vmatprep.subr.bf16.mxu0 0
    %1018 = vmatpush1.bf16.msra.mxu0 %v1000
    %1019 = vmatprep.subr.bf16.mxu0 0
    %1020 = vmatpush1.bf16.msra.mxu0 %v1001
    %1021 = vmatprep.subr.bf16.mxu0 0
    %1022 = vmatpush1.bf16.msra.mxu0 %v1002
    %1023 = vmatprep.subr.bf16.mxu0 0
    %1024 = vmatpush1.bf16.msra.mxu0 %v1003
    %1025 = vmatprep.subr.bf16.mxu0 0
    %1026 = vmatpush1.bf16.msra.mxu0 %v1004
    %1027 = vmatprep.subr.bf16.mxu0 0
    %1028 = vmatpush1.bf16.msra.mxu0 %v1005
    %1029 = vmatprep.subr.bf16.mxu0 0
    %1030 = vmatpush1.bf16.msra.mxu0 %v1006
    %1031 = vmatprep.subr.bf16.mxu0 0
    %1032 = vmatpush1.bf16.msra.mxu0 0
    %1033 = vmatprep.subr.bf16.mxu0 0
    %1034 = vmatpush1.bf16.msra.mxu0 0
    %1035 = vmatprep.subr.bf16.mxu0 0
    %1036 = vmatpush1.bf16.msra.mxu0 0
    %1037 = vmatprep.subr.bf16.mxu0 0
    %1038 = vmatpush1.bf16.msra.mxu0 0
    %1039 = vmatprep.subr.bf16.mxu0 0
    %1040 = vmatpush1.bf16.msra.mxu0 0
    %1041 = vmatprep.subr.bf16.mxu0 0
    %1042 = vmatpush1.bf16.msra.mxu0 0
    %1043 = vmatprep.subr.bf16.mxu0 0
    %1044 = vmatpush1.bf16.msra.mxu0 0
    %1045 = vmatprep.subr.bf16.mxu0 0
    %1046 = vmatpush1.bf16.msra.mxu0 0
    %1047 = vmatprep.mubr.bf16.mxu0 0
    %1048 = vmatmul.mubr.bf16.gmra.mrb[0].mxu0 %v943
    %v1049 = vpop.f32.mrb[0].mxu0
    %v1050 = vadd.f32 %v965, %v1049
    %v1051 = vpop.f32.mrb[0].mxu0
    %v1052 = vpop.f32.mrb[0].mxu0
    %v1053 = vpop.f32.mrb[0].mxu0
    %1054 = vdwg.mxu0
    %v1055 = vmax.f32 %v1050, 0.0
    %v1056 = vpack.c.bf16 %v1055, %v1055
    %v1057 = vld [vmem:[#allocation10] sm:$0xf]
    %v1058 = vld [vmem:[#allocation10 + $0x4] sm:$0xf]
    %v1059 = vld [vmem:[#allocation10 + $0x8] sm:$0xf]
    %v1060 = vld [vmem:[#allocation10 + $0xc] sm:$0xf]
    %v1061 = vld [vmem:[#allocation10 + $0x10] sm:$0xf]
    %v1062 = vld [vmem:[#allocation10 + $0x14] sm:$0xf]
    %v1063 = vld [vmem:[#allocation10 + $0x18] sm:$0xf]
    %v1064 = vld [vmem:[#allocation10 + $0x1c] sm:$0xf]
    %v1065 = vld [vmem:[#allocation10 + $0x20] sm:$0xf]
    %v1066 = vld [vmem:[#allocation10 + $0x24] sm:$0xf]
    %v1067 = vld [vmem:[#allocation10 + $0x28] sm:$0xf]
    %v1068 = vld [vmem:[#allocation10 + $0x2c] sm:$0xf]
    %v1069 = vld [vmem:[#allocation10 + $0x30] sm:$0xf]
    %v1070 = vld [vmem:[#allocation10 + $0x34] sm:$0xf]
    %v1071 = vld [vmem:[#allocation10 + $0x38] sm:$0xf]
    %v1072 = vld [vmem:[#allocation10 + $0x3c] sm:$0xf]
    %v1073 = vld [vmem:[#allocation11] sm:$0x1]
    %v1075 = vlaneseq
    %v1076 = vshrl.u32 %v1075, 7
    %v1077 = vsub.s32 0, %v1076
    %v1078 = vrot.slane %v1073, %v1077
    %v1096 = vunpack.c.l.b16 %v1057
    %v1097 = vunpack.c.l.b16 %v1058
    %v1098 = vunpack.c.l.b16 %v1059
    %v1099 = vunpack.c.l.b16 %v1060
    %v1100 = vunpack.c.l.b16 %v1061
    %v1101 = vunpack.c.l.b16 %v1062
    %v1102 = vunpack.c.l.b16 %v1063
    %v1103 = vunpack.c.l.b16 %v1064
    %v1104 = vunpack.c.l.b16 %v1065
    %v1105 = vunpack.c.l.b16 %v1066
    %v1106 = vunpack.c.l.b16 %v1067
    %v1107 = vunpack.c.l.b16 %v1068
    %v1108 = vunpack.c.l.b16 %v1069
    %v1109 = vunpack.c.l.b16 %v1070
    %v1110 = vunpack.c.l.b16 %v1071
    %v1111 = vunpack.c.l.b16 %v1072
    %v1112 = vpack.c.b16 %v1097, %v1096
    %v1113 = vpack.c.b16 %v1099, %v1098
    %v1114 = vpack.c.b16 %v1101, %v1100
    %v1115 = vpack.c.b16 %v1103, %v1102
    %v1116 = vpack.c.b16 %v1105, %v1104
    %v1117 = vpack.c.b16 %v1107, %v1106
    %v1118 = vpack.c.b16 %v1109, %v1108
    %v1119 = vpack.c.b16 %v1111, %v1110
    %1128 = vmatprep.subr.bf16.mxu0 0
    %1129 = vmatpush1.bf16.msra.mxu0 %v1112
    %1130 = vmatprep.subr.bf16.mxu0 0
    %1131 = vmatpush1.bf16.msra.mxu0 %v1113
    %1132 = vmatprep.subr.bf16.mxu0 0
    %1133 = vmatpush1.bf16.msra.mxu0 %v1114
    %1134 = vmatprep.subr.bf16.mxu0 0
    %1135 = vmatpush1.bf16.msra.mxu0 %v1115
    %1136 = vmatprep.subr.bf16.mxu0 0
    %1137 = vmatpush1.bf16.msra.mxu0 %v1116
    %1138 = vmatprep.subr.bf16.mxu0 0
    %1139 = vmatpush1.bf16.msra.mxu0 %v1117
    %1140 = vmatprep.subr.bf16.mxu0 0
    %1141 = vmatpush1.bf16.msra.mxu0 %v1118
    %1142 = vmatprep.subr.bf16.mxu0 0
    %1143 = vmatpush1.bf16.msra.mxu0 %v1119
    %1144 = vmatprep.subr.bf16.mxu0 0
    %1145 = vmatpush1.bf16.msra.mxu0 0
    %1146 = vmatprep.subr.bf16.mxu0 0
    %1147 = vmatpush1.bf16.msra.mxu0 0
    %1148 = vmatprep.subr.bf16.mxu0 0
    %1149 = vmatpush1.bf16.msra.mxu0 0
    %1150 = vmatprep.subr.bf16.mxu0 0
    %1151 = vmatpush1.bf16.msra.mxu0 0
    %1152 = vmatprep.subr.bf16.mxu0 0
    %1153 = vmatpush1.bf16.msra.mxu0 0
    %1154 = vmatprep.subr.bf16.mxu0 0
    %1155 = vmatpush1.bf16.msra.mxu0 0
    %1156 = vmatprep.subr.bf16.mxu0 0
    %1157 = vmatpush1.bf16.msra.mxu0 0
    %1158 = vmatprep.subr.bf16.mxu0 0
    %1159 = vmatpush1.bf16.msra.mxu0 0
    %1160 = vmatprep.mubr.bf16.mxu0 0
    %1161 = vmatmul.mubr.bf16.gmra.mrb[0].mxu0 %v1056
    %v1162 = vpop.f32.mrb[0].mxu0
    %v1163 = vadd.f32 %v1078, %v1162
    %v1164 = vpop.f32.mrb[0].mxu0
    %v1165 = vpop.f32.mrb[0].mxu0
    %v1166 = vpop.f32.mrb[0].mxu0
    %1167 = vdwg.mxu0
    %v1168 = vadd.f32 %v913, %v1163
    %s1169 = scalar_lea.vmem %s6, 1
    %v1170 = vld [vmem:[%s1169] sm:$0x1]
    %s1171 = scalar_lea.vmem %s7, 1
    %v1172 = vld [vmem:[%s1171] sm:$0x1]
    %1173 = vadd.xlane.f32.xlu0 %v1168
    %v1174 = vpop.xlane.xlu0 %1173
    %v1175 = vmul.f32 %v1174, %v266
    %v1176 = vmul.f32 %v1168, %v1168
    %1177 = vadd.xlane.f32.xlu0 %v1176
    %v1178 = vpop.xlane.xlu0 %1177
    %v1179 = vmul.f32 %v1178, %v266
    %v1180 = vmul.f32 %v1175, %v1175
    %v1181 = vsub.f32 %v1179, %v1180
    %v1182 = vsub.f32 %v1168, %v1175
    %v1183 = vadd.f32 %v1181, 1e-05
    %v1184 = vrsqrt.pop %v1183
    %v1185 = vmul.f32 %v1182, %v1184
    %v1187 = vlaneseq
    %v1188 = vshrl.u32 %v1187, 7
    %v1189 = vsub.s32 0, %v1188
    %v1190 = vrot.slane %v1170, %v1189
    %v1192 = vmul.f32 %v1185, %v1190
    %v1194 = vlaneseq
    %v1195 = vshrl.u32 %v1194, 7
    %v1196 = vsub.s32 0, %v1195
    %v1197 = vrot.slane %v1172, %v1196
    %v1199 = vadd.f32 %v1192, %v1197
    %v1200 = vpack.c.bf16 %v1199, %v1199
    %s1201 = scalar_lea.vmem [#allocation5], 256
    %v1202 = vld [vmem:[%s1201] sm:$0xff]
    %v1203 = vld [vmem:[%s1201 + $0x8] sm:$0xff]
    %v1204 = vld [vmem:[%s1201 + $0x10] sm:$0xff]
    %v1205 = vld [vmem:[%s1201 + $0x18] sm:$0xff]
    %v1206 = vld [vmem:[%s1201 + $0x20] sm:$0xff]
    %v1207 = vld [vmem:[%s1201 + $0x28] sm:$0xff]
    %v1208 = vld [vmem:[%s1201 + $0x30] sm:$0xff]
    %v1209 = vld [vmem:[%s1201 + $0x38] sm:$0xff]
    %v1210 = vld [vmem:[%s1201 + $0x40] sm:$0xff]
    %v1211 = vld [vmem:[%s1201 + $0x48] sm:$0xff]
    %v1212 = vld [vmem:[%s1201 + $0x50] sm:$0xff]
    %v1213 = vld [vmem:[%s1201 + $0x58] sm:$0xff]
    %v1214 = vld [vmem:[%s1201 + $0x60] sm:$0xff]
    %v1215 = vld [vmem:[%s1201 + $0x68] sm:$0xff]
    %v1216 = vld [vmem:[%s1201 + $0x70] sm:$0xff]
    %v1217 = vld [vmem:[%s1201 + $0x78] sm:$0xff]
    %v1218 = vld [vmem:[%s1201 + $0x80] sm:$0xff]
    %v1219 = vld [vmem:[%s1201 + $0x88] sm:$0xff]
    %v1220 = vld [vmem:[%s1201 + $0x90] sm:$0xff]
    %v1221 = vld [vmem:[%s1201 + $0x98] sm:$0xff]
    %v1222 = vld [vmem:[%s1201 + $0xa0] sm:$0xff]
    %v1223 = vld [vmem:[%s1201 + $0xa8] sm:$0xff]
    %v1224 = vld [vmem:[%s1201 + $0xb0] sm:$0xff]
    %v1225 = vld [vmem:[%s1201 + $0xb8] sm:$0xff]
    %v1226 = vld [vmem:[%s1201 + $0xc0] sm:$0xff]
    %v1227 = vld [vmem:[%s1201 + $0xc8] sm:$0xff]
    %v1228 = vld [vmem:[%s1201 + $0xd0] sm:$0xff]
    %v1229 = vld [vmem:[%s1201 + $0xd8] sm:$0xff]
    %v1230 = vld [vmem:[%s1201 + $0xe0] sm:$0xff]
    %v1231 = vld [vmem:[%s1201 + $0xe8] sm:$0xff]
    %v1232 = vld [vmem:[%s1201 + $0xf0] sm:$0xff]
    %v1233 = vld [vmem:[%s1201 + $0xf8] sm:$0xff]
    %s1234 = scalar_lea.vmem %s11, 4
    %v1235 = vld [vmem:[%s1234] sm:$0xf]
    %v1237 = vlaneseq
    %v1238 = vshrl.u32 %v1237, 7
    %v1239 = vsub.s32 0, %v1238
    %v1240 = vrot.slane %v1235, %v1239
    %v1241 = vlaneseq
    %v1242 = vshrl.u32 %v1241, 7
    %v1243 = vsub.s32 1, %v1242
    %v1244 = vrot.slane %v1235, %v1243
    %v1245 = vlaneseq
    %v1246 = vshrl.u32 %v1245, 7
    %v1247 = vsub.s32 2, %v1246
    %v1248 = vrot.slane %v1235, %v1247
    %v1249 = vlaneseq
    %v1250 = vshrl.u32 %v1249, 7
    %v1251 = vsub.s32 3, %v1250
    %v1252 = vrot.slane %v1235, %v1251
    %v1289 = vunpack.c.l.b16 %v1202
    %v1290 = vunpack.c.h.b16 %v1202
    %v1291 = vunpack.c.l.b16 %v1203
    %v1292 = vunpack.c.h.b16 %v1203
    %v1293 = vunpack.c.l.b16 %v1204
    %v1294 = vunpack.c.h.b16 %v1204
    %v1295 = vunpack.c.l.b16 %v1205
    %v1296 = vunpack.c.h.b16 %v1205
    %v1297 = vunpack.c.l.b16 %v1206
    %v1298 = vunpack.c.h.b16 %v1206
    %v1299 = vunpack.c.l.b16 %v1207
    %v1300 = vunpack.c.h.b16 %v1207
    %v1301 = vunpack.c.l.b16 %v1208
    %v1302 = vunpack.c.h.b16 %v1208
    %v1303 = vunpack.c.l.b16 %v1209
    %v1304 = vunpack.c.h.b16 %v1209
    %v1305 = vunpack.c.l.b16 %v1210
    %v1306 = vunpack.c.h.b16 %v1210
    %v1307 = vunpack.c.l.b16 %v1211
    %v1308 = vunpack.c.h.b16 %v1211
    %v1309 = vunpack.c.l.b16 %v1212
    %v1310 = vunpack.c.h.b16 %v1212
    %v1311 = vunpack.c.l.b16 %v1213
    %v1312 = vunpack.c.h.b16 %v1213
    %v1313 = vunpack.c.l.b16 %v1214
    %v1314 = vunpack.c.h.b16 %v1214
    %v1315 = vunpack.c.l.b16 %v1215
    %v1316 = vunpack.c.h.b16 %v1215
    %v1317 = vunpack.c.l.b16 %v1216
    %v1318 = vunpack.c.h.b16 %v1216
    %v1319 = vunpack.c.l.b16 %v1217
    %v1320 = vunpack.c.h.b16 %v1217
    %v1321 = vunpack.c.l.b16 %v1218
    %v1322 = vunpack.c.h.b16 %v1218
    %v1323 = vunpack.c.l.b16 %v1219
    %v1324 = vunpack.c.h.b16 %v1219
    %v1325 = vunpack.c.l.b16 %v1220
    %v1326 = vunpack.c.h.b16 %v1220
    %v1327 = vunpack.c.l.b16 %v1221
    %v1328 = vunpack.c.h.b16 %v1221
    %v1329 = vunpack.c.l.b16 %v1222
    %v1330 = vunpack.c.h.b16 %v1222
    %v1331 = vunpack.c.l.b16 %v1223
    %v1332 = vunpack.c.h.b16 %v1223
    %v1333 = vunpack.c.l.b16 %v1224
    %v1334 = vunpack.c.h.b16 %v1224
    %v1335 = vunpack.c.l.b16 %v1225
    %v1336 = vunpack.c.h.b16 %v1225
    %v1337 = vunpack.c.l.b16 %v1226
    %v1338 = vunpack.c.h.b16 %v1226
    %v1339 = vunpack.c.l.b16 %v1227
    %v1340 = vunpack.c.h.b16 %v1227
    %v1341 = vunpack.c.l.b16 %v1228
    %v1342 = vunpack.c.h.b16 %v1228
    %v1343 = vunpack.c.l.b16 %v1229
    %v1344 = vunpack.c.h.b16 %v1229
    %v1345 = vunpack.c.l.b16 %v1230
    %v1346 = vunpack.c.h.b16 %v1230
    %v1347 = vunpack.c.l.b16 %v1231
    %v1348 = vunpack.c.h.b16 %v1231
    %v1349 = vunpack.c.l.b16 %v1232
    %v1350 = vunpack.c.h.b16 %v1232
    %v1351 = vunpack.c.l.b16 %v1233
    %v1352 = vunpack.c.h.b16 %v1233
    %v1353 = vpack.c.b16 %v1293, %v1289
    %v1354 = vpack.c.b16 %v1294, %v1290
    %v1355 = vpack.c.b16 %v1295, %v1291
    %v1356 = vpack.c.b16 %v1296, %v1292
    %v1357 = vpack.c.b16 %v1301, %v1297
    %v1358 = vpack.c.b16 %v1302, %v1298
    %v1359 = vpack.c.b16 %v1303, %v1299
    %v1360 = vpack.c.b16 %v1304, %v1300
    %v1361 = vpack.c.b16 %v1309, %v1305
    %v1362 = vpack.c.b16 %v1310, %v1306
    %v1363 = vpack.c.b16 %v1311, %v1307
    %v1364 = vpack.c.b16 %v1312, %v1308
    %v1365 = vpack.c.b16 %v1317, %v1313
    %v1366 = vpack.c.b16 %v1318, %v1314
    %v1367 = vpack.c.b16 %v1319, %v1315
    %v1368 = vpack.c.b16 %v1320, %v1316
    %v1369 = vpack.c.b16 %v1325, %v1321
    %v1370 = vpack.c.b16 %v1326, %v1322
    %v1371 = vpack.c.b16 %v1327, %v1323
    %v1372 = vpack.c.b16 %v1328, %v1324
    %v1373 = vpack.c.b16 %v1333, %v1329
    %v1374 = vpack.c.b16 %v1334, %v1330
    %v1375 = vpack.c.b16 %v1335, %v1331
    %v1376 = vpack.c.b16 %v1336, %v1332
    %v1377 = vpack.c.b16 %v1341, %v1337
    %v1378 = vpack.c.b16 %v1342, %v1338
    %v1379 = vpack.c.b16 %v1343, %v1339
    %v1380 = vpack.c.b16 %v1344, %v1340
    %v1381 = vpack.c.b16 %v1349, %v1345
    %v1382 = vpack.c.b16 %v1350, %v1346
    %v1383 = vpack.c.b16 %v1351, %v1347
    %v1384 = vpack.c.b16 %v1352, %v1348
    %1417 = vmatprep.subr.bf16.mxu0 %v1354
    %1418 = vmatpush1.bf16.msra.mxu0 %v1353
    %1419 = vmatprep.subr.bf16.mxu0 %v1358
    %1420 = vmatpush1.bf16.msra.mxu0 %v1357
    %1421 = vmatprep.subr.bf16.mxu0 %v1362
    %1422 = vmatpush1.bf16.msra.mxu0 %v1361
    %1423 = vmatprep.subr.bf16.mxu0 %v1366
    %1424 = vmatpush1.bf16.msra.mxu0 %v1365
    %1425 = vmatprep.subr.bf16.mxu0 %v1370
    %1426 = vmatpush1.bf16.msra.mxu0 %v1369
    %1427 = vmatprep.subr.bf16.mxu0 %v1374
    %1428 = vmatpush1.bf16.msra.mxu0 %v1373
    %1429 = vmatprep.subr.bf16.mxu0 %v1378
    %1430 = vmatpush1.bf16.msra.mxu0 %v1377
    %1431 = vmatprep.subr.bf16.mxu0 %v1382
    %1432 = vmatpush1.bf16.msra.mxu0 %v1381
    %1433 = vmatprep.subr.bf16.mxu0 0
    %1434 = vmatpush1.bf16.msra.mxu0 0
    %1435 = vmatprep.subr.bf16.mxu0 0
    %1436 = vmatpush1.bf16.msra.mxu0 0
    %1437 = vmatprep.subr.bf16.mxu0 0
    %1438 = vmatpush1.bf16.msra.mxu0 0
    %1439 = vmatprep.subr.bf16.mxu0 0
    %1440 = vmatpush1.bf16.msra.mxu0 0
    %1441 = vmatprep.subr.bf16.mxu0 0
    %1442 = vmatpush1.bf16.msra.mxu0 0
    %1443 = vmatprep.subr.bf16.mxu0 0
    %1444 = vmatpush1.bf16.msra.mxu0 0
    %1445 = vmatprep.subr.bf16.mxu0 0
    %1446 = vmatpush1.bf16.msra.mxu0 0
    %1447 = vmatprep.subr.bf16.mxu0 0
    %1448 = vmatpush1.bf16.msra.mxu0 0
    %1449 = vmatprep.mubr.bf16.mxu0 0
    %1450 = vmatmul.mubr.bf16.gmra.mrb[0].mxu0 %v1200
    %v1451 = vpop.f32.mrb[0].mxu0
    %v1452 = vadd.f32 %v1240, %v1451
    %v1453 = vpop.f32.mrb[0].mxu0
    %v1454 = vadd.f32 %v1244, %v1453
    %v1455 = vpop.f32.mrb[0].mxu0
    %v1456 = vpop.f32.mrb[0].mxu0
    %1457 = vdwg.mxu0
    %1458 = vmatprep.subr.bf16.mxu0 %v1356
    %1459 = vmatpush1.bf16.msra.mxu0 %v1355
    %1460 = vmatprep.subr.bf16.mxu0 %v1360
    %1461 = vmatpush1.bf16.msra.mxu0 %v1359
    %1462 = vmatprep.subr.bf16.mxu0 %v1364
    %1463 = vmatpush1.bf16.msra.mxu0 %v1363
    %1464 = vmatprep.subr.bf16.mxu0 %v1368
    %1465 = vmatpush1.bf16.msra.mxu0 %v1367
    %1466 = vmatprep.subr.bf16.mxu0 %v1372
    %1467 = vmatpush1.bf16.msra.mxu0 %v1371
    %1468 = vmatprep.subr.bf16.mxu0 %v1376
    %1469 = vmatpush1.bf16.msra.mxu0 %v1375
    %1470 = vmatprep.subr.bf16.mxu0 %v1380
    %1471 = vmatpush1.bf16.msra.mxu0 %v1379
    %1472 = vmatprep.subr.bf16.mxu0 %v1384
    %1473 = vmatpush1.bf16.msra.mxu0 %v1383
    %1474 = vmatprep.subr.bf16.mxu0 0
    %1475 = vmatpush1.bf16.msra.mxu0 0
    %1476 = vmatprep.subr.bf16.mxu0 0
    %1477 = vmatpush1.bf16.msra.mxu0 0
    %1478 = vmatprep.subr.bf16.mxu0 0
    %1479 = vmatpush1.bf16.msra.mxu0 0
    %1480 = vmatprep.subr.bf16.mxu0 0
    %1481 = vmatpush1.bf16.msra.mxu0 0
    %1482 = vmatprep.subr.bf16.mxu0 0
    %1483 = vmatpush1.bf16.msra.mxu0 0
    %1484 = vmatprep.subr.bf16.mxu0 0
    %1485 = vmatpush1.bf16.msra.mxu0 0
    %1486 = vmatprep.subr.bf16.mxu0 0
    %1487 = vmatpush1.bf16.msra.mxu0 0
    %1488 = vmatprep.subr.bf16.mxu0 0
    %1489 = vmatpush1.bf16.msra.mxu0 0
    %1490 = vmatprep.mubr.bf16.mxu0 0
    %1491 = vmatmul.mubr.bf16.gmra.mrb[0].mxu0 %v1200
    %v1492 = vpop.f32.mrb[0].mxu0
    %v1493 = vadd.f32 %v1248, %v1492
    %v1494 = vpop.f32.mrb[0].mxu0
    %v1495 = vadd.f32 %v1252, %v1494
    %v1496 = vpop.f32.mrb[0].mxu0
    %v1497 = vpop.f32.mrb[0].mxu0
    %1498 = vdwg.mxu0
    %v1500 = vsel %vm589, %v1452, 0
    %v1503 = vsel %vm589, %v1454, 0
    %1505 = vmatprep.subr.mxu0 0.0
    %1506 = vmatpush1.xpose.msra.mxu0 %v1503
    %1507 = vmatprep.subr.mxu0 0.0
    %1508 = vmatpush1.xpose.msra.mxu0 0.0
    %1509 = vmatprep.subr.mxu0 0.0
    %1510 = vmatpush1.xpose.msra.mxu0 0.0
    %1511 = vmatprep.subr.mxu0 0.0
    %1512 = vmatpush1.xpose.msra.mxu0 0.0
    %1513 = vmatprep.subr.mxu0 0.0
    %1514 = vmatpush1.xpose.msra.mxu0 0.0
    %1515 = vmatprep.subr.mxu0 0.0
    %1516 = vmatpush1.xpose.msra.mxu0 0.0
    %1517 = vmatprep.subr.mxu0 0.0
    %1518 = vmatpush1.xpose.msra.mxu0 0.0
    %1519 = vmatprep.subr.mxu0 0.0
    %1520 = vmatpush1.xpose.msra.mxu0 0.0
    %1521 = vmatprep.subr.mxu0 0.0
    %1522 = vmatpush1.xpose.msra.mxu0 0.0
    %1523 = vmatprep.subr.mxu0 0.0
    %1524 = vmatpush1.xpose.msra.mxu0 0.0
    %1525 = vmatprep.subr.mxu0 0.0
    %1526 = vmatpush1.xpose.msra.mxu0 0.0
    %1527 = vmatprep.subr.mxu0 0.0
    %1528 = vmatpush1.xpose.msra.mxu0 0.0
    %1529 = vmatprep.subr.mxu0 0.0
    %1530 = vmatpush1.xpose.msra.mxu0 0.0
    %1531 = vmatprep.subr.mxu0 0.0
    %1532 = vmatpush1.xpose.msra.mxu0 0.0
    %1533 = vmatprep.subr.mxu0 0.0
    %1534 = vmatpush1.xpose.msra.mxu0 0.0
    %1535 = vmatprep.subr.mxu0 0.0
    %1536 = vmatpush1.xpose.msra.mxu0 0.0
    %1537 = vmatprep.subr.mxu0 0.0
    %1538 = vmatpush1.xpose.msra.mxu0 0.0
    %1539 = vmatprep.subr.mxu0 0.0
    %1540 = vmatpush1.xpose.msra.mxu0 0.0
    %1541 = vmatprep.subr.mxu0 0.0
    %1542 = vmatpush1.xpose.msra.mxu0 0.0
    %1543 = vmatprep.subr.mxu0 0.0
    %1544 = vmatpush1.xpose.msra.mxu0 0.0
    %1545 = vmatprep.subr.mxu0 0.0
    %1546 = vmatpush1.xpose.msra.mxu0 0.0
    %1547 = vmatprep.subr.mxu0 0.0
    %1548 = vmatpush1.xpose.msra.mxu0 0.0
    %1549 = vmatprep.subr.mxu0 0.0
    %1550 = vmatpush1.xpose.msra.mxu0 0.0
    %1551 = vmatprep.subr.mxu0 0.0
    %1552 = vmatpush1.xpose.msra.mxu0 0.0
    %1553 = vmatprep.subr.mxu0 0.0
    %1554 = vmatpush1.xpose.msra.mxu0 0.0
    %1555 = vmatprep.subr.mxu0 0.0
    %1556 = vmatpush1.xpose.msra.mxu0 0.0
    %1557 = vmatprep.subr.mxu0 0.0
    %1558 = vmatpush1.xpose.msra.mxu0 0.0
    %1559 = vmatprep.subr.mxu0 0.0
    %1560 = vmatpush1.xpose.msra.mxu0 0.0
    %1561 = vmatprep.subr.mxu0 0.0
    %1562 = vmatpush1.xpose.msra.mxu0 0.0
    %1563 = vmatprep.subr.mxu0 0.0
    %1564 = vmatpush1.xpose.msra.mxu0 0.0
    %1565 = vmatprep.subr.mxu0 0.0
    %1566 = vmatpush1.xpose.msra.mxu0 0.0
    %1567 = vmatprep.subr.mxu0 0.0
    %1568 = vmatpush1.xpose.msra.mxu0 0.0
    %1569 = vmatprep.mubr.f32.mxu0 0.0
    %1570 = vmatmul.mubr.f32.gmra.mrb[0].mxu0 %v1500
    %v1571 = vpop.f32.mrb[0].mxu0
    %v1572 = vadd.f32 %v155, %v1571
    %v1573 = vpop.f32.mrb[0].mxu0
    %1574 = vdwg.mxu0
    %v1575 = vmul.f32 %v1572, 1.442695
    %v1576 = vpow.pop %v1575
    %v1577 = vsel %vm668, %v1576, 0.0
    %1578 = vadd.xlane.f32.xlu0 %v1577
    %v1579 = vpop.xlane.xlu0 %1578
    %v1580 = vrcp.pop %v1579
    %v1581 = vmul.f32 %v1576, %v1580
    %1582 = vrot.lane.b32.xlu0 %v1452, 64
    %v1583 = vpop.permute.xlu0 %1582
    %1584 = vrot.lane.b32.xlu0 %v1454, 64
    %v1585 = vpop.permute.xlu0 %1584
    %v1586 = vsel %vm589, %v1583, 0
    %v1588 = vsel %vm589, %v1585, 0
    %1590 = vmatprep.subr.mxu0 0.0
    %1591 = vmatpush1.xpose.msra.mxu0 %v1588
    %1592 = vmatprep.subr.mxu0 0.0
    %1593 = vmatpush1.xpose.msra.mxu0 0.0
    %1594 = vmatprep.subr.mxu0 0.0
    %1595 = vmatpush1.xpose.msra.mxu0 0.0
    %1596 = vmatprep.subr.mxu0 0.0
    %1597 = vmatpush1.xpose.msra.mxu0 0.0
    %1598 = vmatprep.subr.mxu0 0.0
    %1599 = vmatpush1.xpose.msra.mxu0 0.0
    %1600 = vmatprep.subr.mxu0 0.0
    %1601 = vmatpush1.xpose.msra.mxu0 0.0
    %1602 = vmatprep.subr.mxu0 0.0
    %1603 = vmatpush1.xpose.msra.mxu0 0.0
    %1604 = vmatprep.subr.mxu0 0.0
    %1605 = vmatpush1.xpose.msra.mxu0 0.0
    %1606 = vmatprep.subr.mxu0 0.0
    %1607 = vmatpush1.xpose.msra.mxu0 0.0
    %1608 = vmatprep.subr.mxu0 0.0
    %1609 = vmatpush1.xpose.msra.mxu0 0.0
    %1610 = vmatprep.subr.mxu0 0.0
    %1611 = vmatpush1.xpose.msra.mxu0 0.0
    %1612 = vmatprep.subr.mxu0 0.0
    %1613 = vmatpush1.xpose.msra.mxu0 0.0
    %1614 = vmatprep.subr.mxu0 0.0
    %1615 = vmatpush1.xpose.msra.mxu0 0.0
    %1616 = vmatprep.subr.mxu0 0.0
    %1617 = vmatpush1.xpose.msra.mxu0 0.0
    %1618 = vmatprep.subr.mxu0 0.0
    %1619 = vmatpush1.xpose.msra.mxu0 0.0
    %1620 = vmatprep.subr.mxu0 0.0
    %1621 = vmatpush1.xpose.msra.mxu0 0.0
    %1622 = vmatprep.subr.mxu0 0.0
    %1623 = vmatpush1.xpose.msra.mxu0 0.0
    %1624 = vmatprep.subr.mxu0 0.0
    %1625 = vmatpush1.xpose.msra.mxu0 0.0
    %1626 = vmatprep.subr.mxu0 0.0
    %1627 = vmatpush1.xpose.msra.mxu0 0.0
    %1628 = vmatprep.subr.mxu0 0.0
    %1629 = vmatpush1.xpose.msra.mxu0 0.0
    %1630 = vmatprep.subr.mxu0 0.0
    %1631 = vmatpush1.xpose.msra.mxu0 0.0
    %1632 = vmatprep.subr.mxu0 0.0
    %1633 = vmatpush1.xpose.msra.mxu0 0.0
    %1634 = vmatprep.subr.mxu0 0.0
    %1635 = vmatpush1.xpose.msra.mxu0 0.0
    %1636 = vmatprep.subr.mxu0 0.0
    %1637 = vmatpush1.xpose.msra.mxu0 0.0
    %1638 = vmatprep.subr.mxu0 0.0
    %1639 = vmatpush1.xpose.msra.mxu0 0.0
    %1640 = vmatprep.subr.mxu0 0.0
    %1641 = vmatpush1.xpose.msra.mxu0 0.0
    %1642 = vmatprep.subr.mxu0 0.0
    %1643 = vmatpush1.xpose.msra.mxu0 0.0
    %1644 = vmatprep.subr.mxu0 0.0
    %1645 = vmatpush1.xpose.msra.mxu0 0.0
    %1646 = vmatprep.subr.mxu0 0.0
    %1647 = vmatpush1.xpose.msra.mxu0 0.0
    %1648 = vmatprep.subr.mxu0 0.0
    %1649 = vmatpush1.xpose.msra.mxu0 0.0
    %1650 = vmatprep.subr.mxu0 0.0
    %1651 = vmatpush1.xpose.msra.mxu0 0.0
    %1652 = vmatprep.subr.mxu0 0.0
    %1653 = vmatpush1.xpose.msra.mxu0 0.0
    %1654 = vmatprep.mubr.f32.mxu0 0.0
    %1655 = vmatmul.mubr.f32.gmra.mrb[0].mxu0 %v1586
    %v1656 = vpop.f32.mrb[0].mxu0
    %v1657 = vadd.f32 %v155, %v1656
    %v1658 = vpop.f32.mrb[0].mxu0
    %1659 = vdwg.mxu0
    %v1660 = vmul.f32 %v1657, 1.442695
    %v1661 = vpow.pop %v1660
    %v1662 = vsel %vm668, %v1661, 0.0
    %1663 = vadd.xlane.f32.xlu0 %v1662
    %v1664 = vpop.xlane.xlu0 %1663
    %v1665 = vrcp.pop %v1664
    %v1666 = vmul.f32 %v1661, %v1665
    %v1668 = vsel %vm668, %v1666, 0
    %1670 = vmatprep.subr.mxu0 0.0
    %1671 = vmatpush1.msra.mxu0 %v1495
    %1672 = vmatprep.subr.mxu0 0.0
    %1673 = vmatpush1.msra.mxu0 0.0
    %1674 = vmatprep.subr.mxu0 0.0
    %1675 = vmatpush1.msra.mxu0 0.0
    %1676 = vmatprep.subr.mxu0 0.0
    %1677 = vmatpush1.msra.mxu0 0.0
    %1678 = vmatprep.subr.mxu0 0.0
    %1679 = vmatpush1.msra.mxu0 0.0
    %1680 = vmatprep.subr.mxu0 0.0
    %1681 = vmatpush1.msra.mxu0 0.0
    %1682 = vmatprep.subr.mxu0 0.0
    %1683 = vmatpush1.msra.mxu0 0.0
    %1684 = vmatprep.subr.mxu0 0.0
    %1685 = vmatpush1.msra.mxu0 0.0
    %1686 = vmatprep.subr.mxu0 0.0
    %1687 = vmatpush1.msra.mxu0 0.0
    %1688 = vmatprep.subr.mxu0 0.0
    %1689 = vmatpush1.msra.mxu0 0.0
    %1690 = vmatprep.subr.mxu0 0.0
    %1691 = vmatpush1.msra.mxu0 0.0
    %1692 = vmatprep.subr.mxu0 0.0
    %1693 = vmatpush1.msra.mxu0 0.0
    %1694 = vmatprep.subr.mxu0 0.0
    %1695 = vmatpush1.msra.mxu0 0.0
    %1696 = vmatprep.subr.mxu0 0.0
    %1697 = vmatpush1.msra.mxu0 0.0
    %1698 = vmatprep.subr.mxu0 0.0
    %1699 = vmatpush1.msra.mxu0 0.0
    %1700 = vmatprep.subr.mxu0 0.0
    %1701 = vmatpush1.msra.mxu0 0.0
    %1702 = vmatprep.subr.mxu0 0.0
    %1703 = vmatpush1.msra.mxu0 0.0
    %1704 = vmatprep.subr.mxu0 0.0
    %1705 = vmatpush1.msra.mxu0 0.0
    %1706 = vmatprep.subr.mxu0 0.0
    %1707 = vmatpush1.msra.mxu0 0.0
    %1708 = vmatprep.subr.mxu0 0.0
    %1709 = vmatpush1.msra.mxu0 0.0
    %1710 = vmatprep.subr.mxu0 0.0
    %1711 = vmatpush1.msra.mxu0 0.0
    %1712 = vmatprep.subr.mxu0 0.0
    %1713 = vmatpush1.msra.mxu0 0.0
    %1714 = vmatprep.subr.mxu0 0.0
    %1715 = vmatpush1.msra.mxu0 0.0
    %1716 = vmatprep.subr.mxu0 0.0
    %1717 = vmatpush1.msra.mxu0 0.0
    %1718 = vmatprep.subr.mxu0 0.0
    %1719 = vmatpush1.msra.mxu0 0.0
    %1720 = vmatprep.subr.mxu0 0.0
    %1721 = vmatpush1.msra.mxu0 0.0
    %1722 = vmatprep.subr.mxu0 0.0
    %1723 = vmatpush1.msra.mxu0 0.0
    %1724 = vmatprep.subr.mxu0 0.0
    %1725 = vmatpush1.msra.mxu0 0.0
    %1726 = vmatprep.subr.mxu0 0.0
    %1727 = vmatpush1.msra.mxu0 0.0
    %1728 = vmatprep.subr.mxu0 0.0
    %1729 = vmatpush1.msra.mxu0 0.0
    %1730 = vmatprep.subr.mxu0 0.0
    %1731 = vmatpush1.msra.mxu0 0.0
    %1732 = vmatprep.subr.mxu0 0.0
    %1733 = vmatpush1.msra.mxu0 0.0
    %1734 = vmatprep.mubr.f32.mxu0 0.0
    %1735 = vmatmul.mubr.f32.gmra.mrb[0].mxu0 %v1668
    %v1736 = vpop.f32.mrb[0].mxu0
    %v1737 = vadd.f32 0.0, %v1736
    %v1738 = vpop.f32.mrb[0].mxu0
    %1739 = vdwg.mxu0
    %v1741 = vsel %vm668, %v1581, 0
    %1743 = vmatprep.subr.mxu0 0.0
    %1744 = vmatpush1.msra.mxu0 %v1493
    %1745 = vmatprep.subr.mxu0 0.0
    %1746 = vmatpush1.msra.mxu0 0.0
    %1747 = vmatprep.subr.mxu0 0.0
    %1748 = vmatpush1.msra.mxu0 0.0
    %1749 = vmatprep.subr.mxu0 0.0
    %1750 = vmatpush1.msra.mxu0 0.0
    %1751 = vmatprep.subr.mxu0 0.0
    %1752 = vmatpush1.msra.mxu0 0.0
    %1753 = vmatprep.subr.mxu0 0.0
    %1754 = vmatpush1.msra.mxu0 0.0
    %1755 = vmatprep.subr.mxu0 0.0
    %1756 = vmatpush1.msra.mxu0 0.0
    %1757 = vmatprep.subr.mxu0 0.0
    %1758 = vmatpush1.msra.mxu0 0.0
    %1759 = vmatprep.subr.mxu0 0.0
    %1760 = vmatpush1.msra.mxu0 0.0
    %1761 = vmatprep.subr.mxu0 0.0
    %1762 = vmatpush1.msra.mxu0 0.0
    %1763 = vmatprep.subr.mxu0 0.0
    %1764 = vmatpush1.msra.mxu0 0.0
    %1765 = vmatprep.subr.mxu0 0.0
    %1766 = vmatpush1.msra.mxu0 0.0
    %1767 = vmatprep.subr.mxu0 0.0
    %1768 = vmatpush1.msra.mxu0 0.0
    %1769 = vmatprep.subr.mxu0 0.0
    %1770 = vmatpush1.msra.mxu0 0.0
    %1771 = vmatprep.subr.mxu0 0.0
    %1772 = vmatpush1.msra.mxu0 0.0
    %1773 = vmatprep.subr.mxu0 0.0
    %1774 = vmatpush1.msra.mxu0 0.0
    %1775 = vmatprep.subr.mxu0 0.0
    %1776 = vmatpush1.msra.mxu0 0.0
    %1777 = vmatprep.subr.mxu0 0.0
    %1778 = vmatpush1.msra.mxu0 0.0
    %1779 = vmatprep.subr.mxu0 0.0
    %1780 = vmatpush1.msra.mxu0 0.0
    %1781 = vmatprep.subr.mxu0 0.0
    %1782 = vmatpush1.msra.mxu0 0.0
    %1783 = vmatprep.subr.mxu0 0.0
    %1784 = vmatpush1.msra.mxu0 0.0
    %1785 = vmatprep.subr.mxu0 0.0
    %1786 = vmatpush1.msra.mxu0 0.0
    %1787 = vmatprep.subr.mxu0 0.0
    %1788 = vmatpush1.msra.mxu0 0.0
    %1789 = vmatprep.subr.mxu0 0.0
    %1790 = vmatpush1.msra.mxu0 0.0
    %1791 = vmatprep.subr.mxu0 0.0
    %1792 = vmatpush1.msra.mxu0 0.0
    %1793 = vmatprep.subr.mxu0 0.0
    %1794 = vmatpush1.msra.mxu0 0.0
    %1795 = vmatprep.subr.mxu0 0.0
    %1796 = vmatpush1.msra.mxu0 0.0
    %1797 = vmatprep.subr.mxu0 0.0
    %1798 = vmatpush1.msra.mxu0 0.0
    %1799 = vmatprep.subr.mxu0 0.0
    %1800 = vmatpush1.msra.mxu0 0.0
    %1801 = vmatprep.subr.mxu0 0.0
    %1802 = vmatpush1.msra.mxu0 0.0
    %1803 = vmatprep.subr.mxu0 0.0
    %1804 = vmatpush1.msra.mxu0 0.0
    %1805 = vmatprep.subr.mxu0 0.0
    %1806 = vmatpush1.msra.mxu0 0.0
    %1807 = vmatprep.mubr.f32.mxu0 0.0
    %1808 = vmatmul.mubr.f32.gmra.mrb[0].mxu0 %v1741
    %v1809 = vpop.f32.mrb[0].mxu0
    %v1810 = vadd.f32 %v1737, %v1809
    %v1811 = vpop.f32.mrb[0].mxu0
    %1812 = vdwg.mxu0
    %v1813 = vadd.f32 %v1168, %v1810
    %s1814 = scalar_lea.vmem %s12, 1
    %v1815 = vld [vmem:[%s1814] sm:$0x1]
    %v1817 = vlaneseq
    %v1818 = vshrl.u32 %v1817, 7
    %v1819 = vsub.s32 0, %v1818
    %v1820 = vrot.slane %v1815, %v1819
    %v1822 = vadd.f32 %v1813, %v1820
    %s1823 = scalar_lea.vmem %s8, 1
    %v1824 = vld [vmem:[%s1823] sm:$0x1]
    %s1825 = scalar_lea.vmem %s9, 1
    %v1826 = vld [vmem:[%s1825] sm:$0x1]
    %1827 = vadd.xlane.f32.xlu0 %v1822
    %v1828 = vpop.xlane.xlu0 %1827
    %v1829 = vmul.f32 %v1828, %v266
    %v1830 = vmul.f32 %v1822, %v1822
    %1831 = vadd.xlane.f32.xlu0 %v1830
    %v1832 = vpop.xlane.xlu0 %1831
    %v1833 = vmul.f32 %v1832, %v266
    %v1834 = vmul.f32 %v1829, %v1829
    %v1835 = vsub.f32 %v1833, %v1834
    %v1836 = vsub.f32 %v1822, %v1829
    %v1837 = vadd.f32 %v1835, 1e-05
    %v1838 = vrsqrt.pop %v1837
    %v1839 = vmul.f32 %v1836, %v1838
    %v1841 = vlaneseq
    %v1842 = vshrl.u32 %v1841, 7
    %v1843 = vsub.s32 0, %v1842
    %v1844 = vrot.slane %v1824, %v1843
    %v1846 = vmul.f32 %v1839, %v1844
    %v1848 = vlaneseq
    %v1849 = vshrl.u32 %v1848, 7
    %v1850 = vsub.s32 0, %v1849
    %v1851 = vrot.slane %v1826, %v1850
    %v1853 = vadd.f32 %v1846, %v1851
    %v1854 = vpack.c.bf16 %v1853, %v1853
    %s1855 = scalar_lea.vmem [#allocation7], 64
    %v1856 = vld [vmem:[%s1855] sm:$0xf]
    %v1857 = vld [vmem:[%s1855 + $0x4] sm:$0xf]
    %v1858 = vld [vmem:[%s1855 + $0x8] sm:$0xf]
    %v1859 = vld [vmem:[%s1855 + $0xc] sm:$0xf]
    %v1860 = vld [vmem:[%s1855 + $0x10] sm:$0xf]
    %v1861 = vld [vmem:[%s1855 + $0x14] sm:$0xf]
    %v1862 = vld [vmem:[%s1855 + $0x18] sm:$0xf]
    %v1863 = vld [vmem:[%s1855 + $0x1c] sm:$0xf]
    %v1864 = vld [vmem:[%s1855 + $0x20] sm:$0xf]
    %v1865 = vld [vmem:[%s1855 + $0x24] sm:$0xf]
    %v1866 = vld [vmem:[%s1855 + $0x28] sm:$0xf]
    %v1867 = vld [vmem:[%s1855 + $0x2c] sm:$0xf]
    %v1868 = vld [vmem:[%s1855 + $0x30] sm:$0xf]
    %v1869 = vld [vmem:[%s1855 + $0x34] sm:$0xf]
    %v1870 = vld [vmem:[%s1855 + $0x38] sm:$0xf]
    %v1871 = vld [vmem:[%s1855 + $0x3c] sm:$0xf]
    %s1872 = scalar_lea.vmem [#allocation8], 1
    %v1873 = vld [vmem:[%s1872] sm:$0x1]
    %v1875 = vlaneseq
    %v1876 = vshrl.u32 %v1875, 7
    %v1877 = vsub.s32 0, %v1876
    %v1878 = vrot.slane %v1873, %v1877
    %v1896 = vunpack.c.l.b16 %v1856
    %v1897 = vunpack.c.l.b16 %v1857
    %v1898 = vunpack.c.l.b16 %v1858
    %v1899 = vunpack.c.l.b16 %v1859
    %v1900 = vunpack.c.l.b16 %v1860
    %v1901 = vunpack.c.l.b16 %v1861
    %v1902 = vunpack.c.l.b16 %v1862
    %v1903 = vunpack.c.l.b16 %v1863
    %v1904 = vunpack.c.l.b16 %v1864
    %v1905 = vunpack.c.l.b16 %v1865
    %v1906 = vunpack.c.l.b16 %v1866
    %v1907 = vunpack.c.l.b16 %v1867
    %v1908 = vunpack.c.l.b16 %v1868
    %v1909 = vunpack.c.l.b16 %v1869
    %v1910 = vunpack.c.l.b16 %v1870
    %v1911 = vunpack.c.l.b16 %v1871
    %v1912 = vpack.c.b16 %v1897, %v1896
    %v1913 = vpack.c.b16 %v1899, %v1898
    %v1914 = vpack.c.b16 %v1901, %v1900
    %v1915 = vpack.c.b16 %v1903, %v1902
    %v1916 = vpack.c.b16 %v1905, %v1904
    %v1917 = vpack.c.b16 %v1907, %v1906
    %v1918 = vpack.c.b16 %v1909, %v1908
    %v1919 = vpack.c.b16 %v1911, %v1910
    %1928 = vmatprep.subr.bf16.mxu0 0
    %1929 = vmatpush1.bf16.msra.mxu0 %v1912
    %1930 = vmatprep.subr.bf16.mxu0 0
    %1931 = vmatpush1.bf16.msra.mxu0 %v1913
    %1932 = vmatprep.subr.bf16.mxu0 0
    %1933 = vmatpush1.bf16.msra.mxu0 %v1914
    %1934 = vmatprep.subr.bf16.mxu0 0
    %1935 = vmatpush1.bf16.msra.mxu0 %v1915
    %1936 = vmatprep.subr.bf16.mxu0 0
    %1937 = vmatpush1.bf16.msra.mxu0 %v1916
    %1938 = vmatprep.subr.bf16.mxu0 0
    %1939 = vmatpush1.bf16.msra.mxu0 %v1917
    %1940 = vmatprep.subr.bf16.mxu0 0
    %1941 = vmatpush1.bf16.msra.mxu0 %v1918
    %1942 = vmatprep.subr.bf16.mxu0 0
    %1943 = vmatpush1.bf16.msra.mxu0 %v1919
    %1944 = vmatprep.subr.bf16.mxu0 0
    %1945 = vmatpush1.bf16.msra.mxu0 0
    %1946 = vmatprep.subr.bf16.mxu0 0
    %1947 = vmatpush1.bf16.msra.mxu0 0
    %1948 = vmatprep.subr.bf16.mxu0 0
    %1949 = vmatpush1.bf16.msra.mxu0 0
    %1950 = vmatprep.subr.bf16.mxu0 0
    %1951 = vmatpush1.bf16.msra.mxu0 0
    %1952 = vmatprep.subr.bf16.mxu0 0
    %1953 = vmatpush1.bf16.msra.mxu0 0
    %1954 = vmatprep.subr.bf16.mxu0 0
    %1955 = vmatpush1.bf16.msra.mxu0 0
    %1956 = vmatprep.subr.bf16.mxu0 0
    %1957 = vmatpush1.bf16.msra.mxu0 0
    %1958 = vmatprep.subr.bf16.mxu0 0
    %1959 = vmatpush1.bf16.msra.mxu0 0
    %1960 = vmatprep.mubr.bf16.mxu0 0
    %1961 = vmatmul.mubr.bf16.gmra.mrb[0].mxu0 %v1854
    %v1962 = vpop.f32.mrb[0].mxu0
    %v1963 = vadd.f32 %v1878, %v1962
    %v1964 = vpop.f32.mrb[0].mxu0
    %v1965 = vpop.f32.mrb[0].mxu0
    %v1966 = vpop.f32.mrb[0].mxu0
    %1967 = vdwg.mxu0
    %v1968 = vmax.f32 %v1963, 0.0
    %v1969 = vpack.c.bf16 %v1968, %v1968
    %s1970 = scalar_lea.vmem [#allocation10], 64
    %v1971 = vld [vmem:[%s1970] sm:$0xf]
    %v1972 = vld [vmem:[%s1970 + $0x4] sm:$0xf]
    %v1973 = vld [vmem:[%s1970 + $0x8] sm:$0xf]
    %v1974 = vld [vmem:[%s1970 + $0xc] sm:$0xf]
    %v1975 = vld [vmem:[%s1970 + $0x10] sm:$0xf]
    %v1976 = vld [vmem:[%s1970 + $0x14] sm:$0xf]
    %v1977 = vld [vmem:[%s1970 + $0x18] sm:$0xf]
    %v1978 = vld [vmem:[%s1970 + $0x1c] sm:$0xf]
    %v1979 = vld [vmem:[%s1970 + $0x20] sm:$0xf]
    %v1980 = vld [vmem:[%s1970 + $0x24] sm:$0xf]
    %v1981 = vld [vmem:[%s1970 + $0x28] sm:$0xf]
    %v1982 = vld [vmem:[%s1970 + $0x2c] sm:$0xf]
    %v1983 = vld [vmem:[%s1970 + $0x30] sm:$0xf]
    %v1984 = vld [vmem:[%s1970 + $0x34] sm:$0xf]
    %v1985 = vld [vmem:[%s1970 + $0x38] sm:$0xf]
    %v1986 = vld [vmem:[%s1970 + $0x3c] sm:$0xf]
    %s1987 = scalar_lea.vmem [#allocation11], 1
    %v1988 = vld [vmem:[%s1987] sm:$0x1]
    %v1990 = vlaneseq
    %v1991 = vshrl.u32 %v1990, 7
    %v1992 = vsub.s32 0, %v1991
    %v1993 = vrot.slane %v1988, %v1992
    %v2011 = vunpack.c.l.b16 %v1971
    %v2012 = vunpack.c.l.b16 %v1972
    %v2013 = vunpack.c.l.b16 %v1973
    %v2014 = vunpack.c.l.b16 %v1974
    %v2015 = vunpack.c.l.b16 %v1975
    %v2016 = vunpack.c.l.b16 %v1976
    %v2017 = vunpack.c.l.b16 %v1977
    %v2018 = vunpack.c.l.b16 %v1978
    %v2019 = vunpack.c.l.b16 %v1979
    %v2020 = vunpack.c.l.b16 %v1980
    %v2021 = vunpack.c.l.b16 %v1981
    %v2022 = vunpack.c.l.b16 %v1982
    %v2023 = vunpack.c.l.b16 %v1983
    %v2024 = vunpack.c.l.b16 %v1984
    %v2025 = vunpack.c.l.b16 %v1985
    %v2026 = vunpack.c.l.b16 %v1986
    %v2027 = vpack.c.b16 %v2012, %v2011
    %v2028 = vpack.c.b16 %v2014, %v2013
    %v2029 = vpack.c.b16 %v2016, %v2015
    %v2030 = vpack.c.b16 %v2018, %v2017
    %v2031 = vpack.c.b16 %v2020, %v2019
    %v2032 = vpack.c.b16 %v2022, %v2021
    %v2033 = vpack.c.b16 %v2024, %v2023
    %v2034 = vpack.c.b16 %v2026, %v2025
    %2043 = vmatprep.subr.bf16.mxu0 0
    %2044 = vmatpush1.bf16.msra.mxu0 %v2027
    %2045 = vmatprep.subr.bf16.mxu0 0
    %2046 = vmatpush1.bf16.msra.mxu0 %v2028
    %2047 = vmatprep.subr.bf16.mxu0 0
    %2048 = vmatpush1.bf16.msra.mxu0 %v2029
    %2049 = vmatprep.subr.bf16.mxu0 0
    %2050 = vmatpush1.bf16.msra.mxu0 %v2030
    %2051 = vmatprep.subr.bf16.mxu0 0
    %2052 = vmatpush1.bf16.msra.mxu0 %v2031
    %2053 = vmatprep.subr.bf16.mxu0 0
    %2054 = vmatpush1.bf16.msra.mxu0 %v2032
    %2055 = vmatprep.subr.bf16.mxu0 0
    %2056 = vmatpush1.bf16.msra.mxu0 %v2033
    %2057 = vmatprep.subr.bf16.mxu0 0
    %2058 = vmatpush1.bf16.msra.mxu0 %v2034
    %2059 = vmatprep.subr.bf16.mxu0 0
    %2060 = vmatpush1.bf16.msra.mxu0 0
    %2061 = vmatprep.subr.bf16.mxu0 0
    %2062 = vmatpush1.bf16.msra.mxu0 0
    %2063 = vmatprep.subr.bf16.mxu0 0
    %2064 = vmatpush1.bf16.msra.mxu0 0
    %2065 = vmatprep.subr.bf16.mxu0 0
    %2066 = vmatpush1.bf16.msra.mxu0 0
    %2067 = vmatprep.subr.bf16.mxu0 0
    %2068 = vmatpush1.bf16.msra.mxu0 0
    %2069 = vmatprep.subr.bf16.mxu0 0
    %2070 = vmatpush1.bf16.msra.mxu0 0
    %2071 = vmatprep.subr.bf16.mxu0 0
    %2072 = vmatpush1.bf16.msra.mxu0 0
    %2073 = vmatprep.subr.bf16.mxu0 0
    %2074 = vmatpush1.bf16.msra.mxu0 0
    %2075 = vmatprep.mubr.bf16.mxu0 0
    %2076 = vmatmul.mubr.bf16.gmra.mrb[0].mxu0 %v1969
    %v2077 = vpop.f32.mrb[0].mxu0
    %v2078 = vadd.f32 %v1993, %v2077
    %v2079 = vpop.f32.mrb[0].mxu0
    %v2080 = vpop.f32.mrb[0].mxu0
    %v2081 = vpop.f32.mrb[0].mxu0
    %2082 = vdwg.mxu0
    %v2083 = vadd.f32 %v1822, %v2078
    %v2084 = vld [vmem:[%s3] sm:$0x3]
    %v2086 = vsel %vm668, %v2084, 0
    %2088 = vmatprep.subr.mxu0 0.0
    %2089 = vmatpush1.msra.mxu0 %v2083
    %2090 = vmatprep.subr.mxu0 0.0
    %2091 = vmatpush1.msra.mxu0 0.0
    %2092 = vmatprep.subr.mxu0 0.0
    %2093 = vmatpush1.msra.mxu0 0.0
    %2094 = vmatprep.subr.mxu0 0.0
    %2095 = vmatpush1.msra.mxu0 0.0
    %2096 = vmatprep.subr.mxu0 0.0
    %2097 = vmatpush1.msra.mxu0 0.0
    %2098 = vmatprep.subr.mxu0 0.0
    %2099 = vmatpush1.msra.mxu0 0.0
    %2100 = vmatprep.subr.mxu0 0.0
    %2101 = vmatpush1.msra.mxu0 0.0
    %2102 = vmatprep.subr.mxu0 0.0
    %2103 = vmatpush1.msra.mxu0 0.0
    %2104 = vmatprep.subr.mxu0 0.0
    %2105 = vmatpush1.msra.mxu0 0.0
    %2106 = vmatprep.subr.mxu0 0.0
    %2107 = vmatpush1.msra.mxu0 0.0
    %2108 = vmatprep.subr.mxu0 0.0
    %2109 = vmatpush1.msra.mxu0 0.0
    %2110 = vmatprep.subr.mxu0 0.0
    %2111 = vmatpush1.msra.mxu0 0.0
    %2112 = vmatprep.subr.mxu0 0.0
    %2113 = vmatpush1.msra.mxu0 0.0
    %2114 = vmatprep.subr.mxu0 0.0
    %2115 = vmatpush1.msra.mxu0 0.0
    %2116 = vmatprep.subr.mxu0 0.0
    %2117 = vmatpush1.msra.mxu0 0.0
    %2118 = vmatprep.subr.mxu0 0.0
    %2119 = vmatpush1.msra.mxu0 0.0
    %2120 = vmatprep.subr.mxu0 0.0
    %2121 = vmatpush1.msra.mxu0 0.0
    %2122 = vmatprep.subr.mxu0 0.0
    %2123 = vmatpush1.msra.mxu0 0.0
    %2124 = vmatprep.subr.mxu0 0.0
    %2125 = vmatpush1.msra.mxu0 0.0
    %2126 = vmatprep.subr.mxu0 0.0
    %2127 = vmatpush1.msra.mxu0 0.0
    %2128 = vmatprep.subr.mxu0 0.0
    %2129 = vmatpush1.msra.mxu0 0.0
    %2130 = vmatprep.subr.mxu0 0.0
    %2131 = vmatpush1.msra.mxu0 0.0
    %2132 = vmatprep.subr.mxu0 0.0
    %2133 = vmatpush1.msra.mxu0 0.0
    %2134 = vmatprep.subr.mxu0 0.0
    %2135 = vmatpush1.msra.mxu0 0.0
    %2136 = vmatprep.subr.mxu0 0.0
    %2137 = vmatpush1.msra.mxu0 0.0
    %2138 = vmatprep.subr.mxu0 0.0
    %2139 = vmatpush1.msra.mxu0 0.0
    %2140 = vmatprep.subr.mxu0 0.0
    %2141 = vmatpush1.msra.mxu0 0.0
    %2142 = vmatprep.subr.mxu0 0.0
    %2143 = vmatpush1.msra.mxu0 0.0
    %2144 = vmatprep.subr.mxu0 0.0
    %2145 = vmatpush1.msra.mxu0 0.0
    %2146 = vmatprep.subr.mxu0 0.0
    %2147 = vmatpush1.msra.mxu0 0.0
    %2148 = vmatprep.subr.mxu0 0.0
    %2149 = vmatpush1.msra.mxu0 0.0
    %2150 = vmatprep.subr.mxu0 0.0
    %2151 = vmatpush1.msra.mxu0 0.0
    %2152 = vmatprep.mubr.f32.mxu0 0.0
    %2153 = vmatmul.mubr.f32.gmra.mrb[0].mxu0 %v2086
    %v2154 = vpop.f32.mrb[0].mxu0
    %v2155 = vadd.f32 0.0, %v2154
    %v2156 = vpop.f32.mrb[0].mxu0
    %2157 = vdwg.mxu0
    %v2158 = vld [vmem:[%s17] sm:$0x1]
    %v2159 = vld [vmem:[%s18] sm:$0x1]
    %vm2160 = vcmask 1041408
    %v2161 = vsel %vm2160, %v2155, 0.0
    %2162 = vadd.xlane.f32.xlu0 %v2161
    %v2163 = vpop.xlane.xlu0 %2162
    %v2164 = vmul.f32 %v2163, %v266
    %v2165 = vmul.f32 %v2155, %v2155
    %v2166 = vsel %vm2160, %v2165, 0.0
    %2167 = vadd.xlane.f32.xlu0 %v2166
    %v2168 = vpop.xlane.xlu0 %2167
    %v2169 = vmul.f32 %v2168, %v266
    %v2170 = vmul.f32 %v2164, %v2164
    %v2171 = vsub.f32 %v2169, %v2170
    %v2172 = vsub.f32 %v2155, %v2164
    %v2173 = vadd.f32 %v2171, 1e-05
    %v2174 = vrsqrt.pop %v2173
    %v2175 = vmul.f32 %v2172, %v2174
    %v2177 = vlaneseq
    %v2178 = vshrl.u32 %v2177, 7
    %v2179 = vsub.s32 0, %v2178
    %v2180 = vrot.slane %v2158, %v2179
    %v2182 = vmul.f32 %v2175, %v2180
    %v2184 = vlaneseq
    %v2185 = vshrl.u32 %v2184, 7
    %v2186 = vsub.s32 0, %v2185
    %v2187 = vrot.slane %v2159, %v2186
    %v2189 = vadd.f32 %v2182, %v2187
    %2190 = vst [vmem:[#allocation13] sm:$0x3] %v2189
    // Predicated region
    $region102: #{temporal_transformer.1} parent=1 // pred_check
      _
    $region103: #{temporal_transformer.1} parent=1 // pred_check_branch
      %2192 = sbr.rel (0) target = $region105
    $region104: #{temporal_transformer.1} parent=1 // pred_region
      %s2194 = ssub.s32 32, 32
      %2195 = vsyncadd [#allocation4], %s2194
      %s2197 = sshll.u32 [#allocation13], 4
      %s2198 = int_to_ptr.vmem [resolvable:$true] %s2197
      %2200 = dma.vmem_to_hbm [thread:$0]  %s2198, 32, %s19, [#allocation4]
    $region105: #{temporal_transformer.1} parent=1 // pred_fallthru
      _
    // Predicated region
    $region106: #{temporal_transformer.1} parent=1 // pred_check
      _
    $region107: #{temporal_transformer.1} parent=1 // pred_check_branch
      %2202 = sbr.rel (0) target = $region109
    $region108: #{temporal_transformer.1} parent=1 // pred_region
      %2203 = dma.done [#allocation4], 32
    $region109: #{temporal_transformer.1} parent=1 // pred_fallthru
      _
    %2204 = vsyncpa [#allocation3], 1
    %2205 = vsyncpa [#allocation6], 1
    %2206 = vsyncpa [#allocation9], 1
    %2207 = vsyncpa [#allocation12], 1
    %2208 = vsyncpa [#allocation4], 1

</llo_original>
